<compile_context>
chip_gen: v7x
topology: tpu7x:2x2x1
jax: 0.10.0
libtpu: 0.0.40
codegen_flags: <defaults>
</compile_context>

<pallas_src>
import jax
import jax.numpy as jnp
import numpy as np
from jax.experimental import pallas as pl
from jax.experimental.pallas import tpu as pltpu

# ---------------------------------------------------------------------------
# Model dimensions (nb_movies is data dependent in the original script; we use
# a small lane-friendly synthetic value).
# ---------------------------------------------------------------------------
NB_MOVIES = 256   # "nb_movies"
H1 = 40           # fc1 / fc3 width
H2 = 20           # fc2 width
HP = 128          # padded hidden width (lane-dense layout)
BATCH = 512
TB = 128          # batch tile (sublane-aligned, >=128 rows per grid step)


def sae_kernel(x_ref, w1_ref, b1_ref, w2_ref, b2_ref, w3_ref, b3_ref,
               w4_ref, b4_ref, o_ref):
    """Whole SAE forward for one (TB, NB_MOVIES) batch tile. Matmuls on MXU."""
    x = x_ref[...]                                                   # bf16

    # fc1: bf16 x bf16 -> f32 accumulation, sigmoid in f32.
    h = jnp.dot(x, w1_ref[...], preferred_element_type=jnp.float32) + b1_ref[...]
    h = jax.nn.sigmoid(h)

    # fc2 / fc3: tiny (128x128) matmuls, kept in f32 (negligible cost,
    # minimizes quantization drift).
    h = jnp.dot(h, w2_ref[...], preferred_element_type=jnp.float32) + b2_ref[...]
    h = jax.nn.sigmoid(h)

    h = jnp.dot(h, w3_ref[...], preferred_element_type=jnp.float32) + b3_ref[...]
    h = jax.nn.sigmoid(h)

    # fc4: wide output layer, bf16 MXU-native, f32 accumulation, no activation.
    out = jnp.dot(h.astype(jnp.bfloat16), w4_ref[...],
                  preferred_element_type=jnp.float32) + b4_ref[...]
    o_ref[...] = out.astype(o_ref.dtype)


def _pad2(a, rows, cols):
    """Zero-pad a 2-D array up to (rows, cols)."""
    return jnp.pad(a, ((0, rows - a.shape[0]), (0, cols - a.shape[1])))


def pack_params(params):
    """One-time packing: transpose to (in, out), zero-pad hidden dims to HP,
    cast the wide fc1/fc4 weights to bf16, reshape biases to (1, out).

    Zero padding is exact: padded hidden activations are sigmoid(0)=0.5 but
    always multiply zero rows of the next layer's weight, contributing 0.
    """
    (w1, b1), (w2, b2), (w3, b3), (w4, b4) = params
    w1t = _pad2(w1.T, NB_MOVIES, HP).astype(jnp.bfloat16)    # (M,  HP) bf16
    b1r = _pad2(b1[None, :], 1, HP)                          # (1,  HP) f32
    w2t = _pad2(w2.T, HP, HP)                                # (HP, HP) f32
    b2r = _pad2(b2[None, :], 1, HP)
    w3t = _pad2(w3.T, HP, HP)                                # (HP, HP) f32
    b3r = _pad2(b3[None, :], 1, HP)
    w4t = _pad2(w4.T, HP, NB_MOVIES).astype(jnp.bfloat16)    # (HP, M)  bf16
    b4r = b4[None, :]                                        # (1,  M)  f32
    return (w1t, b1r, w2t, b2r, w3t, b3r, w4t, b4r)


def sae_forward(x, packed):
    """x: (B, NB_MOVIES) -> (B, NB_MOVIES) bfloat16."""
    w1t, b1r, w2t, b2r, w3t, b3r, w4t, b4r = packed
    B, M = x.shape
    assert M == NB_MOVIES and B % TB == 0

    x = x.astype(jnp.bfloat16)                 # no-op if caller already bf16

    full = lambda shape: pl.BlockSpec(shape, lambda i: (0, 0))

    return pl.pallas_call(
        sae_kernel,
        out_shape=jax.ShapeDtypeStruct((B, M), jnp.bfloat16),
        grid_spec=pltpu.PrefetchScalarGridSpec(
            num_scalar_prefetch=0,
            grid=(B // TB,),
            in_specs=[
                pl.BlockSpec((TB, M), lambda i: (i, 0)),   # x tile
                full((M, HP)), full((1, HP)),              # fc1
                full((HP, HP)), full((1, HP)),             # fc2
                full((HP, HP)), full((1, HP)),             # fc3
                full((HP, M)), full((1, M)),               # fc4
            ],
            out_specs=pl.BlockSpec((TB, M), lambda i: (i, 0)),
        ),
        compiler_params=pltpu.CompilerParams(
            dimension_semantics=("parallel",),
            vmem_limit_bytes=32 * 1024 * 1024),
    )(x, w1t, b1r, w2t, b2r, w3t, b3r, w4t, b4r)


def init_params(key):
    """Deterministic synthetic init; PyTorch Linear weight shape is (out, in)."""
    dims = [(H1, NB_MOVIES), (H2, H1), (H1, H2), (NB_MOVIES, H1)]
    params = []
    for out_d, in_d in dims:
        kw, kb, key = jax.random.split(key, 3)
        bound = 1.0 / np.sqrt(in_d)             # PyTorch default U(-1/sqrt(in), 1/sqrt(in))
        w = jax.random.uniform(kw, (out_d, in_d), jnp.float32, -bound, bound)
        b = jax.random.uniform(kb, (out_d,), jnp.float32, -bound, bound)
        params.append((w, b))
    return params


def sae_reference(x, params):
    """Pure-JAX f32 reference mirroring the PyTorch forward."""
    (w1, b1), (w2, b2), (w3, b3), (w4, b4) = params
    h = jax.nn.sigmoid(x @ w1.T + b1)
    h = jax.nn.sigmoid(h @ w2.T + b2)
    h = jax.nn.sigmoid(h @ w3.T + b3)
    return h @ w4.T + b4


if __name__ == "__main__":
    key = jax.random.PRNGKey(0)
    kx, kp = jax.random.split(key)
    x = jax.random.uniform(kx, (BATCH, NB_MOVIES), jnp.float32)  # ratings-like input
    params = init_params(kp)
    packed = pack_params(params)                # one-time weight packing

    out = sae_forward(x, packed)
    out = jax.block_until_ready(out)

    ref = sae_reference(x, params)
    np.testing.assert_allclose(np.asarray(out, dtype=np.float32), np.asarray(ref),
                               rtol=3e-2, atol=3e-2)

    print("KERNEL_OK")
</pallas_src>

<mosaic_0001>
module attributes {stable_mosaic.version = 11 : i64} {
  func.func @sae_kernel(%arg0: i32, %arg1: memref<128x256xbf16, #tpu.memory_space<vmem>>, %arg2: memref<256x128xbf16, #tpu.memory_space<vmem>>, %arg3: memref<1x128xf32, #tpu.memory_space<vmem>>, %arg4: memref<128x128xf32, #tpu.memory_space<vmem>>, %arg5: memref<1x128xf32, #tpu.memory_space<vmem>>, %arg6: memref<128x128xf32, #tpu.memory_space<vmem>>, %arg7: memref<1x128xf32, #tpu.memory_space<vmem>>, %arg8: memref<128x256xbf16, #tpu.memory_space<vmem>>, %arg9: memref<1x256xf32, #tpu.memory_space<vmem>>, %arg10: memref<128x256xbf16, #tpu.memory_space<vmem>>) attributes {dimension_semantics = [#tpu.dimension_semantics<parallel>], iteration_bounds = array<i64: 4>, scalar_prefetch = 0 : i64, scratch_operands = 0 : i64, tpu.core_type = #tpu.core_type<tc>, window_params = [{transform_indices = @transform_0, window_bounds = array<i64: 128, 256>}, {pipeline_mode = #tpu.pipeline_mode<synchronous>, transform_indices = @transform_1, window_bounds = array<i64: 256, 128>}, {pipeline_mode = #tpu.pipeline_mode<synchronous>, transform_indices = @transform_2, window_bounds = array<i64: 1, 128>}, {pipeline_mode = #tpu.pipeline_mode<synchronous>, transform_indices = @transform_3, window_bounds = array<i64: 128, 128>}, {pipeline_mode = #tpu.pipeline_mode<synchronous>, transform_indices = @transform_4, window_bounds = array<i64: 1, 128>}, {pipeline_mode = #tpu.pipeline_mode<synchronous>, transform_indices = @transform_5, window_bounds = array<i64: 128, 128>}, {pipeline_mode = #tpu.pipeline_mode<synchronous>, transform_indices = @transform_6, window_bounds = array<i64: 1, 128>}, {pipeline_mode = #tpu.pipeline_mode<synchronous>, transform_indices = @transform_7, window_bounds = array<i64: 128, 256>}, {pipeline_mode = #tpu.pipeline_mode<synchronous>, transform_indices = @transform_8, window_bounds = array<i64: 1, 256>}, {transform_indices = @transform_9, window_bounds = array<i64: 128, 256>}]} {
    %c0 = arith.constant 0 : index
    %c0_0 = arith.constant 0 : index
    %0 = vector.load %arg1[%c0, %c0_0] : memref<128x256xbf16, #tpu.memory_space<vmem>>, vector<128x256xbf16>
    %c0_1 = arith.constant 0 : index
    %c0_2 = arith.constant 0 : index
    %1 = vector.load %arg2[%c0_1, %c0_2] : memref<256x128xbf16, #tpu.memory_space<vmem>>, vector<256x128xbf16>
    %cst = arith.constant dense<0.000000e+00> : vector<128x128xf32>
    %2 = tpu.matmul %0, %1, %cst {dimension_numbers = #tpu.dot_dimension_numbers<[1], [0], [0], [1], [0, 0, 1, 1], [], []>} : vector<128x256xbf16>, vector<256x128xbf16>, vector<128x128xf32> -> vector<128x128xf32>
    %c0_3 = arith.constant 0 : index
    %c0_4 = arith.constant 0 : index
    %3 = vector.load %arg3[%c0_3, %c0_4] : memref<1x128xf32, #tpu.memory_space<vmem>>, vector<1x128xf32>
    %4 = vector.broadcast %3 : vector<1x128xf32> to vector<128x128xf32>
    %5 = arith.addf %2, %4 : vector<128x128xf32>
    %6 = arith.negf %5 : vector<128x128xf32>
    %7 = math.exp %6 : vector<128x128xf32>
    %cst_5 = arith.constant 1.000000e+00 : f32
    %8 = vector.broadcast %cst_5 : f32 to vector<128x128xf32>
    %9 = arith.addf %8, %7 : vector<128x128xf32>
    %10 = arith.divf %8, %9 : vector<128x128xf32>
    %c0_6 = arith.constant 0 : index
    %c0_7 = arith.constant 0 : index
    %11 = vector.load %arg4[%c0_6, %c0_7] : memref<128x128xf32, #tpu.memory_space<vmem>>, vector<128x128xf32>
    %cst_8 = arith.constant dense<0.000000e+00> : vector<128x128xf32>
    %12 = tpu.matmul %10, %11, %cst_8 {dimension_numbers = #tpu.dot_dimension_numbers<[1], [0], [0], [1], [0, 0, 1, 1], [], []>} : vector<128x128xf32>, vector<128x128xf32>, vector<128x128xf32> -> vector<128x128xf32>
    %c0_9 = arith.constant 0 : index
    %c0_10 = arith.constant 0 : index
    %13 = vector.load %arg5[%c0_9, %c0_10] : memref<1x128xf32, #tpu.memory_space<vmem>>, vector<1x128xf32>
    %14 = vector.broadcast %13 : vector<1x128xf32> to vector<128x128xf32>
    %15 = arith.addf %12, %14 : vector<128x128xf32>
    %16 = arith.negf %15 : vector<128x128xf32>
    %17 = math.exp %16 : vector<128x128xf32>
    %cst_11 = arith.constant 1.000000e+00 : f32
    %18 = vector.broadcast %cst_11 : f32 to vector<128x128xf32>
    %19 = arith.addf %18, %17 : vector<128x128xf32>
    %20 = arith.divf %18, %19 : vector<128x128xf32>
    %c0_12 = arith.constant 0 : index
    %c0_13 = arith.constant 0 : index
    %21 = vector.load %arg6[%c0_12, %c0_13] : memref<128x128xf32, #tpu.memory_space<vmem>>, vector<128x128xf32>
    %cst_14 = arith.constant dense<0.000000e+00> : vector<128x128xf32>
    %22 = tpu.matmul %20, %21, %cst_14 {dimension_numbers = #tpu.dot_dimension_numbers<[1], [0], [0], [1], [0, 0, 1, 1], [], []>} : vector<128x128xf32>, vector<128x128xf32>, vector<128x128xf32> -> vector<128x128xf32>
    %c0_15 = arith.constant 0 : index
    %c0_16 = arith.constant 0 : index
    %23 = vector.load %arg7[%c0_15, %c0_16] : memref<1x128xf32, #tpu.memory_space<vmem>>, vector<1x128xf32>
    %24 = vector.broadcast %23 : vector<1x128xf32> to vector<128x128xf32>
    %25 = arith.addf %22, %24 : vector<128x128xf32>
    %26 = arith.negf %25 : vector<128x128xf32>
    %27 = math.exp %26 : vector<128x128xf32>
    %cst_17 = arith.constant 1.000000e+00 : f32
    %28 = vector.broadcast %cst_17 : f32 to vector<128x128xf32>
    %29 = arith.addf %28, %27 : vector<128x128xf32>
    %30 = arith.divf %28, %29 : vector<128x128xf32>
    %31 = arith.truncf %30 : vector<128x128xf32> to vector<128x128xbf16>
    %c0_18 = arith.constant 0 : index
    %c0_19 = arith.constant 0 : index
    %32 = vector.load %arg8[%c0_18, %c0_19] : memref<128x256xbf16, #tpu.memory_space<vmem>>, vector<128x256xbf16>
    %cst_20 = arith.constant dense<0.000000e+00> : vector<128x256xf32>
    %33 = tpu.matmul %31, %32, %cst_20 {dimension_numbers = #tpu.dot_dimension_numbers<[1], [0], [0], [1], [0, 0, 1, 1], [], []>} : vector<128x128xbf16>, vector<128x256xbf16>, vector<128x256xf32> -> vector<128x256xf32>
    %c0_21 = arith.constant 0 : index
    %c0_22 = arith.constant 0 : index
    %34 = vector.load %arg9[%c0_21, %c0_22] : memref<1x256xf32, #tpu.memory_space<vmem>>, vector<1x256xf32>
    %35 = vector.broadcast %34 : vector<1x256xf32> to vector<128x256xf32>
    %36 = arith.addf %33, %35 : vector<128x256xf32>
    %37 = arith.truncf %36 : vector<128x256xf32> to vector<128x256xbf16>
    %c0_23 = arith.constant 0 : index
    %c0_24 = arith.constant 0 : index
    %38 = vector.load %arg10[%c0_23, %c0_24] : memref<128x256xbf16, #tpu.memory_space<vmem>>, vector<128x256xbf16>
    tpu.vector_store %arg10[%c0_23, %c0_24], %37 {strides = array<i32>} : memref<128x256xbf16, #tpu.memory_space<vmem>>, vector<128x256xbf16>,
    return
  }
  func.func @transform_0(%arg0: i32) -> (i32, i32) {
    %c0_i32 = arith.constant 0 : i32
    %c0_i32_0 = arith.constant 0 : i32
    return %arg0, %c0_i32 : i32, i32
  }
  func.func @transform_1(%arg0: i32) -> (i32, i32) {
    %c0_i32 = arith.constant 0 : i32
    %c0_i32_0 = arith.constant 0 : i32
    %c0_i32_1 = arith.constant 0 : i32
    return %c0_i32, %c0_i32_0 : i32, i32
  }
  func.func @transform_2(%arg0: i32) -> (i32, i32) {
    %c0_i32 = arith.constant 0 : i32
    %c0_i32_0 = arith.constant 0 : i32
    %c0_i32_1 = arith.constant 0 : i32
    return %c0_i32, %c0_i32_0 : i32, i32
  }
  func.func @transform_3(%arg0: i32) -> (i32, i32) {
    %c0_i32 = arith.constant 0 : i32
    %c0_i32_0 = arith.constant 0 : i32
    %c0_i32_1 = arith.constant 0 : i32
    return %c0_i32, %c0_i32_0 : i32, i32
  }
  func.func @transform_4(%arg0: i32) -> (i32, i32) {
    %c0_i32 = arith.constant 0 : i32
    %c0_i32_0 = arith.constant 0 : i32
    %c0_i32_1 = arith.constant 0 : i32
    return %c0_i32, %c0_i32_0 : i32, i32
  }
  func.func @transform_5(%arg0: i32) -> (i32, i32) {
    %c0_i32 = arith.constant 0 : i32
    %c0_i32_0 = arith.constant 0 : i32
    %c0_i32_1 = arith.constant 0 : i32
    return %c0_i32, %c0_i32_0 : i32, i32
  }
  func.func @transform_6(%arg0: i32) -> (i32, i32) {
    %c0_i32 = arith.constant 0 : i32
    %c0_i32_0 = arith.constant 0 : i32
    %c0_i32_1 = arith.constant 0 : i32
    return %c0_i32, %c0_i32_0 : i32, i32
  }
  func.func @transform_7(%arg0: i32) -> (i32, i32) {
    %c0_i32 = arith.constant 0 : i32
    %c0_i32_0 = arith.constant 0 : i32
    %c0_i32_1 = arith.constant 0 : i32
    return %c0_i32, %c0_i32_0 : i32, i32
  }
  func.func @transform_8(%arg0: i32) -> (i32, i32) {
    %c0_i32 = arith.constant 0 : i32
    %c0_i32_0 = arith.constant 0 : i32
    %c0_i32_1 = arith.constant 0 : i32
    return %c0_i32, %c0_i32_0 : i32, i32
  }
  func.func @transform_9(%arg0: i32) -> (i32, i32) {
    %c0_i32 = arith.constant 0 : i32
    %c0_i32_0 = arith.constant 0 : i32
    return %arg0, %c0_i32 : i32, i32
  }
}

</mosaic_0001>

<llo_original>
// kernel: tpu_custom_call.1
$region0: #{tpu_custom_call.1}
  #allocation0 [shape = 'u32[]', space=smem, size = 0x4, offset = 0x4, fixed_abs, tag = 'smem constant byte address 0x4 - core index']
  #allocation1 [shape = 'u32[144,128]{1,0:T(1,128)}', space=vmem, size = 0x12000, scoped, tag = 'internal scratch']
  %s0 = inlined_call_operand.hbm [shape: bf16[512,256], index: 0, kind: input, shape index: {}]
  %s1 = inlined_call_operand.hbm [shape: bf16[256,128], index: 1, kind: input, shape index: {}]
  %s2 = inlined_call_operand.vmem [shape: f32[1,128], index: 2, kind: input, shape index: {}]
  %s3 = inlined_call_operand.hbm [shape: f32[128,128], index: 3, kind: input, shape index: {}]
  %s4 = inlined_call_operand.vmem [shape: f32[1,128], index: 4, kind: input, shape index: {}]
  %s5 = inlined_call_operand.hbm [shape: f32[128,128], index: 5, kind: input, shape index: {}]
  %s6 = inlined_call_operand.vmem [shape: f32[1,128], index: 6, kind: input, shape index: {}]
  %s7 = inlined_call_operand.hbm [shape: bf16[128,256], index: 7, kind: input, shape index: {}]
  %s8 = inlined_call_operand.vmem [shape: f32[1,256], index: 8, kind: input, shape index: {}]
  %s9 = inlined_call_operand.hbm [shape: bf16[512,256], index: 9, kind: output, shape index: {}]
  %s10 = sld [smem:[#allocation0]]
  $region89: #{tpu_custom_call.1} parent=0
    _
  %s12 = ssub.s32 1, %s10
  %s13 = scalar_select 0, %s12, %s10
  $region1: #{tpu_custom_call.1} parent=0
    #allocation2 [shape = 'u8[131072]{0}', space=vmem, size = 0x20000, scoped, tag = 'input window, operand 0']
    #allocation3 [shape = 's32[2]{0}', space=sflag, size = 0x8, scoped, tag = 'scoped memory for tpu_custom_call.1']
    #allocation4 [shape = 's32[2]{0}', space=sflag, size = 0x8, scoped, tag = 'scoped memory for tpu_custom_call.1']
    #allocation5 [shape = 'u8[65536]{0}', space=vmem, size = 0x10000, scoped, tag = 'input window, operand 1, single buffered']
    #allocation6 [shape = 's32[1]{0}', space=sflag, size = 0x4, scoped, tag = 'scoped memory for tpu_custom_call.1']
    #allocation7 [shape = 'u8[65536]{0}', space=vmem, size = 0x10000, scoped, tag = 'input window, operand 3, single buffered']
    #allocation8 [shape = 'u8[65536]{0}', space=vmem, size = 0x10000, scoped, tag = 'input window, operand 5, single buffered']
    #allocation9 [shape = 's32[1]{0}', space=sflag, size = 0x4, scoped, tag = 'scoped memory for tpu_custom_call.1']
    #allocation10 [shape = 'u8[65536]{0}', space=vmem, size = 0x10000, scoped, tag = 'input window, operand 7, single buffered']
    #allocation11 [shape = 'u8[131072]{0}', space=vmem, size = 0x20000, scoped, tag = 'output window, operand 0']
    %14 = vsyncpa [#allocation3], 0
    %s15 = scalar_lea.sflag [#allocation3], 1
    %16 = vsyncpa %s15, 0
    %17 = vsyncpa [#allocation6], 0
    %18 = vsyncpa [#allocation9], 0
    %19 = vsyncpa [#allocation4], 0
    %s20 = scalar_lea.sflag [#allocation4], 1
    %21 = vsyncpa %s20, 0
    loop: start=0, step=1, limit=6
    $region2: #{tpu_custom_call.1} parent=1 // loop_pre_header
      _
    $region3: #{tpu_custom_call.1} parent=1 // loop_header
      %s23 = sphi 0, %s27
      %p24 = scmp.ge.s32.totalorder %s23, 6
      %s33 = sphi 0, %s35
      %s36 = sphi 0, %s33
      %s37 = sphi 0, %s36
      %s53 = sphi 0, %s37
      %s57 = sphi 0, %s57
      %s59 = sphi 0, %s57
      %s60 = sphi 0, %s59
      %s74 = sphi 0, %s60
      %s78 = sphi 0, %s78
      %s80 = sphi 0, %s78
      %s81 = sphi 0, %s80
      %s95 = sphi 0, %s81
      %s99 = sphi 0, %s99
      %s101 = sphi 0, %s99
      %s102 = sphi 0, %s101
      %s116 = sphi 0, %s102
      %s120 = sphi 0, %s120
      %s122 = sphi 0, %s120
      %s123 = sphi 0, %s122
      %s137 = sphi 0, %s123
      %s141 = sphi 0, %s141
      %s143 = sphi 0, %s141
      %s144 = sphi 0, %s143
      %s158 = sphi 0, %s144
      %s162 = sphi 0, %s162
      %s164 = sphi 0, %s162
      %s165 = sphi 0, %s164
      %s179 = sphi 0, %s165
      %s183 = sphi 0, %s183
      %s185 = sphi 0, %s183
      %s186 = sphi 0, %s185
      %s200 = sphi 0, %s186
      %s204 = sphi 0, %s204
      %s206 = sphi 0, %s204
      %s207 = sphi 0, %s206
      %s221 = sphi 0, %s207
      %s227 = sphi 0, %s229
      %s230 = sphi 0, %s227
      %s231 = sphi 0, %s230
      %s247 = sphi 0, %s231
    $region4: #{tpu_custom_call.1} parent=1 // loop_header_branch
      %26 = sbr.rel (%p24) target = $region8
    $region5: #{tpu_custom_call.1} parent=1 // loop_body
      %s28 = ssub.s32 %s23, 1
      %s29 = ssub.s32 %s23, 2
      %s30 = sadd.s32 %s23, 1
      %s31 = ssub.s32 %s23, %s30
      %p32 = scmp.eq.s32.totalorder %s31, 0
      %s34 = sadd.s32 %s33, 1
      %s35 = scalar_select %p32, %s33, %s34
      %p38 = pneg %p32
      %p39 = scmp.eq.s32.totalorder %s23, 3
      %p40 = por %p38, %p39
      %p41 = scmp.ne.s32.totalorder %s33, %s36
      %p42 = scmp.eq.s32.totalorder %s23, 0
      %p43 = por %p41, %p42
      %p44 = scmp.ne.s32.totalorder %s33, %s36
      %p45 = scmp.eq.s32.totalorder %s28, 3
      %p46 = por %p44, %p45
      %p47 = scmp.ne.s32.totalorder %s36, %s37
      %p48 = scmp.eq.s32.totalorder %s28, 0
      %p49 = por %p47, %p48
      %p50 = scmp.ne.s32.totalorder %s36, %s37
      %p51 = scmp.eq.s32.totalorder %s29, 3
      %p52 = por %p50, %p51
      %p54 = scmp.ne.s32.totalorder %s37, %s53
      %p55 = scmp.eq.s32.totalorder %s29, 0
      %p56 = por %p54, %p55
      %s58 = sadd.s32 %s57, 1
      %p61 = scmp.eq.s32.totalorder %s23, 3
      %p62 = scmp.ne.s32.totalorder %s57, %s59
      %p63 = scmp.eq.s32.totalorder %s23, 0
      %p64 = por %p62, %p63
      %p65 = scmp.ne.s32.totalorder %s57, %s59
      %p66 = scmp.eq.s32.totalorder %s28, 3
      %p67 = por %p65, %p66
      %p68 = scmp.ne.s32.totalorder %s59, %s60
      %p69 = scmp.eq.s32.totalorder %s28, 0
      %p70 = por %p68, %p69
      %p71 = scmp.ne.s32.totalorder %s59, %s60
      %p72 = scmp.eq.s32.totalorder %s29, 3
      %p73 = por %p71, %p72
      %p75 = scmp.ne.s32.totalorder %s60, %s74
      %p76 = scmp.eq.s32.totalorder %s29, 0
      %p77 = por %p75, %p76
      %s79 = sadd.s32 %s78, 1
      %p82 = scmp.eq.s32.totalorder %s23, 3
      %p83 = scmp.ne.s32.totalorder %s78, %s80
      %p84 = scmp.eq.s32.totalorder %s23, 0
      %p85 = por %p83, %p84
      %p86 = scmp.ne.s32.totalorder %s78, %s80
      %p87 = scmp.eq.s32.totalorder %s28, 3
      %p88 = por %p86, %p87
      %p89 = scmp.ne.s32.totalorder %s80, %s81
      %p90 = scmp.eq.s32.totalorder %s28, 0
      %p91 = por %p89, %p90
      %p92 = scmp.ne.s32.totalorder %s80, %s81
      %p93 = scmp.eq.s32.totalorder %s29, 3
      %p94 = por %p92, %p93
      %p96 = scmp.ne.s32.totalorder %s81, %s95
      %p97 = scmp.eq.s32.totalorder %s29, 0
      %p98 = por %p96, %p97
      %s100 = sadd.s32 %s99, 1
      %p103 = scmp.eq.s32.totalorder %s23, 3
      %p104 = scmp.ne.s32.totalorder %s99, %s101
      %p105 = scmp.eq.s32.totalorder %s23, 0
      %p106 = por %p104, %p105
      %p107 = scmp.ne.s32.totalorder %s99, %s101
      %p108 = scmp.eq.s32.totalorder %s28, 3
      %p109 = por %p107, %p108
      %p110 = scmp.ne.s32.totalorder %s101, %s102
      %p111 = scmp.eq.s32.totalorder %s28, 0
      %p112 = por %p110, %p111
      %p113 = scmp.ne.s32.totalorder %s101, %s102
      %p114 = scmp.eq.s32.totalorder %s29, 3
      %p115 = por %p113, %p114
      %p117 = scmp.ne.s32.totalorder %s102, %s116
      %p118 = scmp.eq.s32.totalorder %s29, 0
      %p119 = por %p117, %p118
      %s121 = sadd.s32 %s120, 1
      %p124 = scmp.eq.s32.totalorder %s23, 3
      %p125 = scmp.ne.s32.totalorder %s120, %s122
      %p126 = scmp.eq.s32.totalorder %s23, 0
      %p127 = por %p125, %p126
      %p128 = scmp.ne.s32.totalorder %s120, %s122
      %p129 = scmp.eq.s32.totalorder %s28, 3
      %p130 = por %p128, %p129
      %p131 = scmp.ne.s32.totalorder %s122, %s123
      %p132 = scmp.eq.s32.totalorder %s28, 0
      %p133 = por %p131, %p132
      %p134 = scmp.ne.s32.totalorder %s122, %s123
      %p135 = scmp.eq.s32.totalorder %s29, 3
      %p136 = por %p134, %p135
      %p138 = scmp.ne.s32.totalorder %s123, %s137
      %p139 = scmp.eq.s32.totalorder %s29, 0
      %p140 = por %p138, %p139
      %s142 = sadd.s32 %s141, 1
      %p145 = scmp.eq.s32.totalorder %s23, 3
      %p146 = scmp.ne.s32.totalorder %s141, %s143
      %p147 = scmp.eq.s32.totalorder %s23, 0
      %p148 = por %p146, %p147
      %p149 = scmp.ne.s32.totalorder %s141, %s143
      %p150 = scmp.eq.s32.totalorder %s28, 3
      %p151 = por %p149, %p150
      %p152 = scmp.ne.s32.totalorder %s143, %s144
      %p153 = scmp.eq.s32.totalorder %s28, 0
      %p154 = por %p152, %p153
      %p155 = scmp.ne.s32.totalorder %s143, %s144
      %p156 = scmp.eq.s32.totalorder %s29, 3
      %p157 = por %p155, %p156
      %p159 = scmp.ne.s32.totalorder %s144, %s158
      %p160 = scmp.eq.s32.totalorder %s29, 0
      %p161 = por %p159, %p160
      %s163 = sadd.s32 %s162, 1
      %p166 = scmp.eq.s32.totalorder %s23, 3
      %p167 = scmp.ne.s32.totalorder %s162, %s164
      %p168 = scmp.eq.s32.totalorder %s23, 0
      %p169 = por %p167, %p168
      %p170 = scmp.ne.s32.totalorder %s162, %s164
      %p171 = scmp.eq.s32.totalorder %s28, 3
      %p172 = por %p170, %p171
      %p173 = scmp.ne.s32.totalorder %s164, %s165
      %p174 = scmp.eq.s32.totalorder %s28, 0
      %p175 = por %p173, %p174
      %p176 = scmp.ne.s32.totalorder %s164, %s165
      %p177 = scmp.eq.s32.totalorder %s29, 3
      %p178 = por %p176, %p177
      %p180 = scmp.ne.s32.totalorder %s165, %s179
      %p181 = scmp.eq.s32.totalorder %s29, 0
      %p182 = por %p180, %p181
      %s184 = sadd.s32 %s183, 1
      %p187 = scmp.eq.s32.totalorder %s23, 3
      %p188 = scmp.ne.s32.totalorder %s183, %s185
      %p189 = scmp.eq.s32.totalorder %s23, 0
      %p190 = por %p188, %p189
      %p191 = scmp.ne.s32.totalorder %s183, %s185
      %p192 = scmp.eq.s32.totalorder %s28, 3
      %p193 = por %p191, %p192
      %p194 = scmp.ne.s32.totalorder %s185, %s186
      %p195 = scmp.eq.s32.totalorder %s28, 0
      %p196 = por %p194, %p195
      %p197 = scmp.ne.s32.totalorder %s185, %s186
      %p198 = scmp.eq.s32.totalorder %s29, 3
      %p199 = por %p197, %p198
      %p201 = scmp.ne.s32.totalorder %s186, %s200
      %p202 = scmp.eq.s32.totalorder %s29, 0
      %p203 = por %p201, %p202
      %s205 = sadd.s32 %s204, 1
      %p208 = scmp.eq.s32.totalorder %s23, 3
      %p209 = scmp.ne.s32.totalorder %s204, %s206
      %p210 = scmp.eq.s32.totalorder %s23, 0
      %p211 = por %p209, %p210
      %p212 = scmp.ne.s32.totalorder %s204, %s206
      %p213 = scmp.eq.s32.totalorder %s28, 3
      %p214 = por %p212, %p213
      %p215 = scmp.ne.s32.totalorder %s206, %s207
      %p216 = scmp.eq.s32.totalorder %s28, 0
      %p217 = por %p215, %p216
      %p218 = scmp.ne.s32.totalorder %s206, %s207
      %p219 = scmp.eq.s32.totalorder %s29, 3
      %p220 = por %p218, %p219
      %p222 = scmp.ne.s32.totalorder %s207, %s221
      %p223 = scmp.eq.s32.totalorder %s29, 0
      %p224 = por %p222, %p223
      %s225 = ssub.s32 %s23, %s30
      %p226 = scmp.eq.s32.totalorder %s225, 0
      %s228 = sadd.s32 %s227, 1
      %s229 = scalar_select %p226, %s227, %s228
      %p232 = pneg %p226
      %p233 = scmp.eq.s32.totalorder %s23, 3
      %p234 = por %p232, %p233
      %p235 = scmp.ne.s32.totalorder %s227, %s230
      %p236 = scmp.eq.s32.totalorder %s23, 0
      %p237 = por %p235, %p236
      %p238 = scmp.ne.s32.totalorder %s227, %s230
      %p239 = scmp.eq.s32.totalorder %s28, 3
      %p240 = por %p238, %p239
      %p241 = scmp.ne.s32.totalorder %s230, %s231
      %p242 = scmp.eq.s32.totalorder %s28, 0
      %p243 = por %p241, %p242
      %p244 = scmp.ne.s32.totalorder %s230, %s231
      %p245 = scmp.eq.s32.totalorder %s29, 3
      %p246 = por %p244, %p245
      %p248 = scmp.ne.s32.totalorder %s231, %s247
      %p249 = scmp.eq.s32.totalorder %s29, 0
      %p250 = por %p248, %p249
      %p251 = scmp.le.s32.totalorder 1, %s23
      %p252 = scmp.lt.s32.totalorder %s23, 5
      %p253 = pnand %p251, %p252
      %p254 = pneg %p253
      // Predicated region
      $region9: #{tpu_custom_call.1} parent=5 // pred_check
        _
      $region10: #{tpu_custom_call.1} parent=5 // pred_check_branch
        %256 = sbr.rel (%p253) target = $region12
      $region11: #{tpu_custom_call.1} parent=5 // pred_region
        %s257 = ssub.s32 %s23, 1
        // Predicated region
        $region13: #{tpu_custom_call.1} parent=11 // pred_check
          %p258 = pneg %p70
        $region14: #{tpu_custom_call.1} parent=11 // pred_check_branch
          %260 = sbr.rel (%p258) target = $region16
        $region15: #{tpu_custom_call.1} parent=11 // pred_region
          %s262 = ssub.s32 2048, 2048
          %263 = vsyncadd [#allocation6], %s262
          %s264 = sshll.u32 [#allocation5], 4
          %s265 = int_to_ptr.vmem [resolvable:$true] %s264
          %270 = dma.hbm_to_vmem [thread:$0]  %s1, 2048, %s265, [#allocation6], 64, 64, 4
        $region16: #{tpu_custom_call.1} parent=11 // pred_fallthru
          _
        // Predicated region
        $region17: #{tpu_custom_call.1} parent=11 // pred_check
          %p271 = pneg %p91
        $region18: #{tpu_custom_call.1} parent=11 // pred_check_branch
          %273 = sbr.rel (%p271) target = $region20
        $region19: #{tpu_custom_call.1} parent=11 // pred_region
          _
        $region20: #{tpu_custom_call.1} parent=11 // pred_fallthru
          _
        // Predicated region
        $region21: #{tpu_custom_call.1} parent=11 // pred_check
          %p274 = pneg %p112
        $region22: #{tpu_custom_call.1} parent=11 // pred_check_branch
          %276 = sbr.rel (%p274) target = $region24
        $region23: #{tpu_custom_call.1} parent=11 // pred_region
          %s278 = ssub.s32 2048, 2048
          %279 = vsyncadd [#allocation6], %s278
          %s280 = sshll.u32 [#allocation7], 4
          %s281 = int_to_ptr.vmem [resolvable:$true] %s280
          %286 = dma.hbm_to_vmem [thread:$0]  %s3, 2048, %s281, [#allocation6], 128, 128, 8
        $region24: #{tpu_custom_call.1} parent=11 // pred_fallthru
          _
        // Predicated region
        $region25: #{tpu_custom_call.1} parent=11 // pred_check
          %p287 = pneg %p133
        $region26: #{tpu_custom_call.1} parent=11 // pred_check_branch
          %289 = sbr.rel (%p287) target = $region28
        $region27: #{tpu_custom_call.1} parent=11 // pred_region
          _
        $region28: #{tpu_custom_call.1} parent=11 // pred_fallthru
          _
        // Predicated region
        $region29: #{tpu_custom_call.1} parent=11 // pred_check
          %p290 = pneg %p154
        $region30: #{tpu_custom_call.1} parent=11 // pred_check_branch
          %292 = sbr.rel (%p290) target = $region32
        $region31: #{tpu_custom_call.1} parent=11 // pred_region
          %s294 = ssub.s32 2048, 2048
          %295 = vsyncadd [#allocation9], %s294
          %s296 = sshll.u32 [#allocation8], 4
          %s297 = int_to_ptr.vmem [resolvable:$true] %s296
          %302 = dma.hbm_to_vmem [thread:$0]  %s5, 2048, %s297, [#allocation9], 128, 128, 8
        $region32: #{tpu_custom_call.1} parent=11 // pred_fallthru
          _
        // Predicated region
        $region33: #{tpu_custom_call.1} parent=11 // pred_check
          %p303 = pneg %p175
        $region34: #{tpu_custom_call.1} parent=11 // pred_check_branch
          %305 = sbr.rel (%p303) target = $region36
        $region35: #{tpu_custom_call.1} parent=11 // pred_region
          _
        $region36: #{tpu_custom_call.1} parent=11 // pred_fallthru
          _
        // Predicated region
        $region37: #{tpu_custom_call.1} parent=11 // pred_check
          %p306 = pneg %p196
        $region38: #{tpu_custom_call.1} parent=11 // pred_check_branch
          %308 = sbr.rel (%p306) target = $region40
        $region39: #{tpu_custom_call.1} parent=11 // pred_region
          %s310 = ssub.s32 2048, 2048
          %311 = vsyncadd [#allocation9], %s310
          %s312 = sshll.u32 [#allocation10], 4
          %s313 = int_to_ptr.vmem [resolvable:$true] %s312
          %318 = dma.hbm_to_vmem [thread:$0]  %s7, 2048, %s313, [#allocation9], 128, 128, 8
        $region40: #{tpu_custom_call.1} parent=11 // pred_fallthru
          _
        // Predicated region
        $region41: #{tpu_custom_call.1} parent=11 // pred_check
          %p319 = pneg %p217
        $region42: #{tpu_custom_call.1} parent=11 // pred_check_branch
          %321 = sbr.rel (%p319) target = $region44
        $region43: #{tpu_custom_call.1} parent=11 // pred_region
          _
        $region44: #{tpu_custom_call.1} parent=11 // pred_fallthru
          _
      $region12: #{tpu_custom_call.1} parent=5 // pred_fallthru
        _
      %p322 = scmp.lt.s32.totalorder %s23, 4
      // Predicated region
      $region45: #{tpu_custom_call.1} parent=5 // pred_check
        %p323 = pneg %p322
      $region46: #{tpu_custom_call.1} parent=5 // pred_check_branch
        %325 = sbr.rel (%p323) target = $region48
      $region47: #{tpu_custom_call.1} parent=5 // pred_region
        // Predicated region
        $region49: #{tpu_custom_call.1} parent=47 // pred_check
          %p326 = pneg %p43
        $region50: #{tpu_custom_call.1} parent=47 // pred_check_branch
          %328 = sbr.rel (%p326) target = $region52
        $region51: #{tpu_custom_call.1} parent=47 // pred_region
          %s329 = sand.u32 %s33, 1
          %s330 = scalar_lea.sflag [#allocation3], %s329
          %s331 = sand.u32 %s33, 1
          %s332 = smul.addr %s331, 128
          %s333 = scalar_lea.vmem [#allocation2], %s332
          %s334 = smul.u32 16, %s23
          %s336 = ssub.s32 2048, 2048
          %337 = vsyncadd %s330, %s336
          %s338 = smul.addr %s334, 2
          %s339 = smul.addr %s338, 64
          %s340 = scalar_lea.hbm %s0, %s339
          %s341 = sshll.u32 %s333, 4
          %s342 = int_to_ptr.vmem [resolvable:$true] %s341
          %347 = dma.hbm_to_vmem [thread:$0]  %s340, 2048, %s342, %s330, 128, 128, 8
        $region52: #{tpu_custom_call.1} parent=47 // pred_fallthru
          _
      $region48: #{tpu_custom_call.1} parent=5 // pred_fallthru
        _
      %p348 = scmp.le.s32.totalorder 1, %s23
      %p349 = scmp.lt.s32.totalorder %s23, 5
      %p350 = pnand %p348, %p349
      %p351 = pneg %p350
      // Predicated region
      $region53: #{tpu_custom_call.1} parent=5 // pred_check
        _
      $region54: #{tpu_custom_call.1} parent=5 // pred_check_branch
        %353 = sbr.rel (%p350) target = $region56
      $region55: #{tpu_custom_call.1} parent=5 // pred_region
        %s354 = ssub.s32 %s23, 1
        %s355 = sand.u32 %s36, 1
        %s356 = scalar_lea.sflag [#allocation3], %s355
        %s357 = sand.u32 %s36, 1
        %s358 = smul.addr %s357, 128
        %s359 = scalar_lea.vmem [#allocation2], %s358
        // Predicated region
        $region57: #{tpu_custom_call.1} parent=55 // pred_check
          %p360 = pneg %p49
        $region58: #{tpu_custom_call.1} parent=55 // pred_check_branch
          %362 = sbr.rel (%p360) target = $region60
        $region59: #{tpu_custom_call.1} parent=55 // pred_region
          %363 = dma.done %s356, 2048
        $region60: #{tpu_custom_call.1} parent=55 // pred_fallthru
          _
        // Predicated region
        $region61: #{tpu_custom_call.1} parent=55 // pred_check
          %p364 = pneg %p70
        $region62: #{tpu_custom_call.1} parent=55 // pred_check_branch
          %366 = sbr.rel (%p364) target = $region64
        $region63: #{tpu_custom_call.1} parent=55 // pred_region
          %367 = dma.done [#allocation6], 2048
        $region64: #{tpu_custom_call.1} parent=55 // pred_fallthru
          _
        // Predicated region
        $region65: #{tpu_custom_call.1} parent=55 // pred_check
          %p368 = pneg %p112
        $region66: #{tpu_custom_call.1} parent=55 // pred_check_branch
          %370 = sbr.rel (%p368) target = $region68
        $region67: #{tpu_custom_call.1} parent=55 // pred_region
          %371 = dma.done [#allocation6], 2048
        $region68: #{tpu_custom_call.1} parent=55 // pred_fallthru
          _
        // Predicated region
        $region69: #{tpu_custom_call.1} parent=55 // pred_check
          %p372 = pneg %p154
        $region70: #{tpu_custom_call.1} parent=55 // pred_check_branch
          %374 = sbr.rel (%p372) target = $region72
        $region71: #{tpu_custom_call.1} parent=55 // pred_region
          %375 = dma.done [#allocation9], 2048
        $region72: #{tpu_custom_call.1} parent=55 // pred_fallthru
          _
        // Predicated region
        $region73: #{tpu_custom_call.1} parent=55 // pred_check
          %p376 = pneg %p196
        $region74: #{tpu_custom_call.1} parent=55 // pred_check_branch
          %378 = sbr.rel (%p376) target = $region76
        $region75: #{tpu_custom_call.1} parent=55 // pred_region
          %379 = dma.done [#allocation9], 2048
        $region76: #{tpu_custom_call.1} parent=55 // pred_fallthru
          _
        %s380 = sand.u32 %s36, 1
        %s381 = scalar_lea.sflag [#allocation3], %s380
        %s382 = sand.u32 %s36, 1
        %s383 = smul.addr %s382, 128
        %s384 = scalar_lea.vmem [#allocation2], %s383
        %p385 = pneg %p49
        %p386 = pneg %p46
        %p387 = pneg %p70
        %p388 = pneg %p67
        %p389 = pneg %p91
        %p390 = pneg %p88
        %p391 = pneg %p112
        %p392 = pneg %p109
        %p393 = pneg %p133
        %p394 = pneg %p130
        %p395 = pneg %p154
        %p396 = pneg %p151
        %p397 = pneg %p175
        %p398 = pneg %p172
        %p399 = pneg %p196
        %p400 = pneg %p193
        %p401 = pneg %p217
        %p402 = pneg %p214
        %p403 = pneg %p243
        %p404 = pneg %p240
        %s405 = sand.u32 %s230, 1
        %s406 = scalar_lea.sflag [#allocation4], %s405
        %s407 = sand.u32 %s230, 1
        %s408 = smul.addr %s407, 128
        %s409 = scalar_lea.vmem [#allocation11], %s408
        %s410 = smul.u32 16, %s28
        %s411 = smul.u32 16, %s28
        %v413 = vld [vmem:[%s359] sm:$0xff]
        %v414 = vld [vmem:[%s359 + $0x8] sm:$0xff]
        %v415 = vld [vmem:[%s359 + $0x10] sm:$0xff]
        %v416 = vld [vmem:[%s359 + $0x18] sm:$0xff]
        %v417 = vld [vmem:[%s359 + $0x20] sm:$0xff]
        %v418 = vld [vmem:[%s359 + $0x28] sm:$0xff]
        %v419 = vld [vmem:[%s359 + $0x30] sm:$0xff]
        %v420 = vld [vmem:[%s359 + $0x38] sm:$0xff]
        %v421 = vld [vmem:[%s359 + $0x40] sm:$0xff]
        %v422 = vld [vmem:[%s359 + $0x48] sm:$0xff]
        %v423 = vld [vmem:[%s359 + $0x50] sm:$0xff]
        %v424 = vld [vmem:[%s359 + $0x58] sm:$0xff]
        %v425 = vld [vmem:[%s359 + $0x60] sm:$0xff]
        %v426 = vld [vmem:[%s359 + $0x68] sm:$0xff]
        %v427 = vld [vmem:[%s359 + $0x70] sm:$0xff]
        %v428 = vld [vmem:[%s359 + $0x78] sm:$0xff]
        %v429 = vld [vmem:[#allocation5] sm:$0xf]
        %v430 = vld [vmem:[#allocation5 + $0x4] sm:$0xf]
        %v431 = vld [vmem:[#allocation5 + $0x8] sm:$0xf]
        %v432 = vld [vmem:[#allocation5 + $0xc] sm:$0xf]
        %v433 = vld [vmem:[#allocation5 + $0x10] sm:$0xf]
        %v434 = vld [vmem:[#allocation5 + $0x14] sm:$0xf]
        %v435 = vld [vmem:[#allocation5 + $0x18] sm:$0xf]
        %v436 = vld [vmem:[#allocation5 + $0x1c] sm:$0xf]
        %v437 = vld [vmem:[#allocation5 + $0x20] sm:$0xf]
        %v438 = vld [vmem:[#allocation5 + $0x24] sm:$0xf]
        %v439 = vld [vmem:[#allocation5 + $0x28] sm:$0xf]
        %v440 = vld [vmem:[#allocation5 + $0x2c] sm:$0xf]
        %v441 = vld [vmem:[#allocation5 + $0x30] sm:$0xf]
        %v442 = vld [vmem:[#allocation5 + $0x34] sm:$0xf]
        %v443 = vld [vmem:[#allocation5 + $0x38] sm:$0xf]
        %v444 = vld [vmem:[#allocation5 + $0x3c] sm:$0xf]
        %v445 = vld [vmem:[#allocation5 + $0x40] sm:$0xf]
        %v446 = vld [vmem:[#allocation5 + $0x44] sm:$0xf]
        %v447 = vld [vmem:[#allocation5 + $0x48] sm:$0xf]
        %v448 = vld [vmem:[#allocation5 + $0x4c] sm:$0xf]
        %v449 = vld [vmem:[#allocation5 + $0x50] sm:$0xf]
        %v450 = vld [vmem:[#allocation5 + $0x54] sm:$0xf]
        %v451 = vld [vmem:[#allocation5 + $0x58] sm:$0xf]
        %v452 = vld [vmem:[#allocation5 + $0x5c] sm:$0xf]
        %v453 = vld [vmem:[#allocation5 + $0x60] sm:$0xf]
        %v454 = vld [vmem:[#allocation5 + $0x64] sm:$0xf]
        %v455 = vld [vmem:[#allocation5 + $0x68] sm:$0xf]
        %v456 = vld [vmem:[#allocation5 + $0x6c] sm:$0xf]
        %v457 = vld [vmem:[#allocation5 + $0x70] sm:$0xf]
        %v458 = vld [vmem:[#allocation5 + $0x74] sm:$0xf]
        %v459 = vld [vmem:[#allocation5 + $0x78] sm:$0xf]
        %v460 = vld [vmem:[#allocation5 + $0x7c] sm:$0xf]
        %v461 = vld [vmem:[%s2] sm:$0x1]
        %v463 = vlaneseq
        %v464 = vshrl.u32 %v463, 7
        %v465 = vsub.s32 0, %v464
        %v466 = vrot.slane %v461, %v465
        %v484 = vunpack.c.l.b16 %v413
        %v485 = vunpack.c.h.b16 %v413
        %v486 = vunpack.c.l.b16 %v414
        %v487 = vunpack.c.h.b16 %v414
        %v488 = vunpack.c.l.b16 %v415
        %v489 = vunpack.c.h.b16 %v415
        %v490 = vunpack.c.l.b16 %v416
        %v491 = vunpack.c.h.b16 %v416
        %v492 = vunpack.c.l.b16 %v417
        %v493 = vunpack.c.h.b16 %v417
        %v494 = vunpack.c.l.b16 %v418
        %v495 = vunpack.c.h.b16 %v418
        %v496 = vunpack.c.l.b16 %v419
        %v497 = vunpack.c.h.b16 %v419
        %v498 = vunpack.c.l.b16 %v420
        %v499 = vunpack.c.h.b16 %v420
        %v500 = vunpack.c.l.b16 %v421
        %v501 = vunpack.c.h.b16 %v421
        %v502 = vunpack.c.l.b16 %v422
        %v503 = vunpack.c.h.b16 %v422
        %v504 = vunpack.c.l.b16 %v423
        %v505 = vunpack.c.h.b16 %v423
        %v506 = vunpack.c.l.b16 %v424
        %v507 = vunpack.c.h.b16 %v424
        %v508 = vunpack.c.l.b16 %v425
        %v509 = vunpack.c.h.b16 %v425
        %v510 = vunpack.c.l.b16 %v426
        %v511 = vunpack.c.h.b16 %v426
        %v512 = vunpack.c.l.b16 %v427
        %v513 = vunpack.c.h.b16 %v427
        %v514 = vunpack.c.l.b16 %v428
        %v515 = vunpack.c.h.b16 %v428
        %v516 = vpack.c.b16 %v486, %v484
        %v517 = vpack.c.b16 %v487, %v485
        %v518 = vpack.c.b16 %v490, %v488
        %v519 = vpack.c.b16 %v491, %v489
        %v520 = vpack.c.b16 %v494, %v492
        %v521 = vpack.c.b16 %v495, %v493
        %v522 = vpack.c.b16 %v498, %v496
        %v523 = vpack.c.b16 %v499, %v497
        %v524 = vpack.c.b16 %v502, %v500
        %v525 = vpack.c.b16 %v503, %v501
        %v526 = vpack.c.b16 %v506, %v504
        %v527 = vpack.c.b16 %v507, %v505
        %v528 = vpack.c.b16 %v510, %v508
        %v529 = vpack.c.b16 %v511, %v509
        %v530 = vpack.c.b16 %v514, %v512
        %v531 = vpack.c.b16 %v515, %v513
        %v580 = vunpack.c.l.b16 %v429
        %v581 = vunpack.c.l.b16 %v430
        %v582 = vunpack.c.l.b16 %v431
        %v583 = vunpack.c.l.b16 %v432
        %v584 = vunpack.c.l.b16 %v433
        %v585 = vunpack.c.l.b16 %v434
        %v586 = vunpack.c.l.b16 %v435
        %v587 = vunpack.c.l.b16 %v436
        %v588 = vunpack.c.l.b16 %v437
        %v589 = vunpack.c.l.b16 %v438
        %v590 = vunpack.c.l.b16 %v439
        %v591 = vunpack.c.l.b16 %v440
        %v592 = vunpack.c.l.b16 %v441
        %v593 = vunpack.c.l.b16 %v442
        %v594 = vunpack.c.l.b16 %v443
        %v595 = vunpack.c.l.b16 %v444
        %v596 = vunpack.c.l.b16 %v445
        %v597 = vunpack.c.l.b16 %v446
        %v598 = vunpack.c.l.b16 %v447
        %v599 = vunpack.c.l.b16 %v448
        %v600 = vunpack.c.l.b16 %v449
        %v601 = vunpack.c.l.b16 %v450
        %v602 = vunpack.c.l.b16 %v451
        %v603 = vunpack.c.l.b16 %v452
        %v604 = vunpack.c.l.b16 %v453
        %v605 = vunpack.c.l.b16 %v454
        %v606 = vunpack.c.l.b16 %v455
        %v607 = vunpack.c.l.b16 %v456
        %v608 = vunpack.c.l.b16 %v457
        %v609 = vunpack.c.l.b16 %v458
        %v610 = vunpack.c.l.b16 %v459
        %v611 = vunpack.c.l.b16 %v460
        %v612 = vpack.c.b16 %v581, %v580
        %v613 = vpack.c.b16 %v583, %v582
        %v614 = vpack.c.b16 %v585, %v584
        %v615 = vpack.c.b16 %v587, %v586
        %v616 = vpack.c.b16 %v589, %v588
        %v617 = vpack.c.b16 %v591, %v590
        %v618 = vpack.c.b16 %v593, %v592
        %v619 = vpack.c.b16 %v595, %v594
        %v620 = vpack.c.b16 %v597, %v596
        %v621 = vpack.c.b16 %v599, %v598
        %v622 = vpack.c.b16 %v601, %v600
        %v623 = vpack.c.b16 %v603, %v602
        %v624 = vpack.c.b16 %v605, %v604
        %v625 = vpack.c.b16 %v607, %v606
        %v626 = vpack.c.b16 %v609, %v608
        %v627 = vpack.c.b16 %v611, %v610
        %644 = vmatprep.subr.bf16.mxu0 0
        %645 = vmatpush1.bf16.msra.mxu0 %v612
        %646 = vmatprep.subr.bf16.mxu0 0
        %647 = vmatpush1.bf16.msra.mxu0 %v613
        %648 = vmatprep.subr.bf16.mxu0 0
        %649 = vmatpush1.bf16.msra.mxu0 %v614
        %650 = vmatprep.subr.bf16.mxu0 0
        %651 = vmatpush1.bf16.msra.mxu0 %v615
        %652 = vmatprep.subr.bf16.mxu0 0
        %653 = vmatpush1.bf16.msra.mxu0 %v616
        %654 = vmatprep.subr.bf16.mxu0 0
        %655 = vmatpush1.bf16.msra.mxu0 %v617
        %656 = vmatprep.subr.bf16.mxu0 0
        %657 = vmatpush1.bf16.msra.mxu0 %v618
        %658 = vmatprep.subr.bf16.mxu0 0
        %659 = vmatpush1.bf16.msra.mxu0 %v619
        %660 = vmatprep.subr.bf16.mxu0 0
        %661 = vmatpush1.bf16.msra.mxu0 %v620
        %662 = vmatprep.subr.bf16.mxu0 0
        %663 = vmatpush1.bf16.msra.mxu0 %v621
        %664 = vmatprep.subr.bf16.mxu0 0
        %665 = vmatpush1.bf16.msra.mxu0 %v622
        %666 = vmatprep.subr.bf16.mxu0 0
        %667 = vmatpush1.bf16.msra.mxu0 %v623
        %668 = vmatprep.subr.bf16.mxu0 0
        %669 = vmatpush1.bf16.msra.mxu0 %v624
        %670 = vmatprep.subr.bf16.mxu0 0
        %671 = vmatpush1.bf16.msra.mxu0 %v625
        %672 = vmatprep.subr.bf16.mxu0 0
        %673 = vmatpush1.bf16.msra.mxu0 %v626
        %674 = vmatprep.subr.bf16.mxu0 0
        %675 = vmatpush1.bf16.msra.mxu0 %v627
        %676 = vmatprep.mubr.bf16.mxu0 %v517
        %677 = vmatmul.mubr.bf16.gmra.mrb[0].mxu0 %v516
        %v678 = vpop.f32.mrb[0].mxu0
        %v679 = vadd.f32 %v466, %v678
        %v680 = vpop.f32.mrb[0].mxu0
        %v681 = vpop.f32.mrb[0].mxu0
        %v682 = vadd.f32 %v466, %v681
        %v683 = vpop.f32.mrb[0].mxu0
        %684 = vmatprep.mubr.bf16.mxu0 %v519
        %685 = vmatmul.mubr.bf16.gmra.mrb[0].mxu0 %v518
        %v686 = vpop.f32.mrb[0].mxu0
        %v687 = vadd.f32 %v466, %v686
        %v688 = vpop.f32.mrb[0].mxu0
        %v689 = vpop.f32.mrb[0].mxu0
        %v690 = vadd.f32 %v466, %v689
        %v691 = vpop.f32.mrb[0].mxu0
        %692 = vmatprep.mubr.bf16.mxu0 %v521
        %693 = vmatmul.mubr.bf16.gmra.mrb[0].mxu0 %v520
        %v694 = vpop.f32.mrb[0].mxu0
        %v695 = vadd.f32 %v466, %v694
        %v696 = vpop.f32.mrb[0].mxu0
        %v697 = vpop.f32.mrb[0].mxu0
        %v698 = vadd.f32 %v466, %v697
        %v699 = vpop.f32.mrb[0].mxu0
        %700 = vmatprep.mubr.bf16.mxu0 %v523
        %701 = vmatmul.mubr.bf16.gmra.mrb[0].mxu0 %v522
        %v702 = vpop.f32.mrb[0].mxu0
        %v703 = vadd.f32 %v466, %v702
        %v704 = vpop.f32.mrb[0].mxu0
        %v705 = vpop.f32.mrb[0].mxu0
        %v706 = vadd.f32 %v466, %v705
        %v707 = vpop.f32.mrb[0].mxu0
        %708 = vmatprep.mubr.bf16.mxu0 %v525
        %709 = vmatmul.mubr.bf16.gmra.mrb[0].mxu0 %v524
        %v710 = vpop.f32.mrb[0].mxu0
        %v711 = vadd.f32 %v466, %v710
        %v712 = vpop.f32.mrb[0].mxu0
        %v713 = vpop.f32.mrb[0].mxu0
        %v714 = vadd.f32 %v466, %v713
        %v715 = vpop.f32.mrb[0].mxu0
        %716 = vmatprep.mubr.bf16.mxu0 %v527
        %717 = vmatmul.mubr.bf16.gmra.mrb[0].mxu0 %v526
        %v718 = vpop.f32.mrb[0].mxu0
        %v719 = vadd.f32 %v466, %v718
        %v720 = vpop.f32.mrb[0].mxu0
        %v721 = vpop.f32.mrb[0].mxu0
        %v722 = vadd.f32 %v466, %v721
        %v723 = vpop.f32.mrb[0].mxu0
        %724 = vmatprep.mubr.bf16.mxu0 %v529
        %725 = vmatmul.mubr.bf16.gmra.mrb[0].mxu0 %v528
        %v726 = vpop.f32.mrb[0].mxu0
        %v727 = vadd.f32 %v466, %v726
        %v728 = vpop.f32.mrb[0].mxu0
        %v729 = vpop.f32.mrb[0].mxu0
        %v730 = vadd.f32 %v466, %v729
        %v731 = vpop.f32.mrb[0].mxu0
        %732 = vmatprep.mubr.bf16.mxu0 %v531
        %733 = vmatmul.mubr.bf16.gmra.mrb[0].mxu0 %v530
        %v734 = vpop.f32.mrb[0].mxu0
        %v735 = vadd.f32 %v466, %v734
        %v736 = vpop.f32.mrb[0].mxu0
        %v737 = vpop.f32.mrb[0].mxu0
        %v738 = vadd.f32 %v466, %v737
        %v739 = vpop.f32.mrb[0].mxu0
        %740 = vdwg.mxu0
        %v741 = vxor.u32 %v679, 2147483648
        %v742 = vxor.u32 %v682, 2147483648
        %v743 = vxor.u32 %v687, 2147483648
        %v744 = vxor.u32 %v690, 2147483648
        %v745 = vxor.u32 %v695, 2147483648
        %v746 = vxor.u32 %v698, 2147483648
        %v747 = vxor.u32 %v703, 2147483648
        %v748 = vxor.u32 %v706, 2147483648
        %v749 = vxor.u32 %v711, 2147483648
        %v750 = vxor.u32 %v714, 2147483648
        %v751 = vxor.u32 %v719, 2147483648
        %v752 = vxor.u32 %v722, 2147483648
        %v753 = vxor.u32 %v727, 2147483648
        %v754 = vxor.u32 %v730, 2147483648
        %v755 = vxor.u32 %v735, 2147483648
        %v756 = vxor.u32 %v738, 2147483648
        %v757 = vmul.f32 %v741, 1.442695
        %v758 = vpow.pop %v757
        %v759 = vmul.f32 %v742, 1.442695
        %v760 = vpow.pop %v759
        %v761 = vmul.f32 %v743, 1.442695
        %v762 = vpow.pop %v761
        %v763 = vmul.f32 %v744, 1.442695
        %v764 = vpow.pop %v763
        %v765 = vmul.f32 %v745, 1.442695
        %v766 = vpow.pop %v765
        %v767 = vmul.f32 %v746, 1.442695
        %v768 = vpow.pop %v767
        %v769 = vmul.f32 %v747, 1.442695
        %v770 = vpow.pop %v769
        %v771 = vmul.f32 %v748, 1.442695
        %v772 = vpow.pop %v771
        %v773 = vmul.f32 %v749, 1.442695
        %v774 = vpow.pop %v773
        %v775 = vmul.f32 %v750, 1.442695
        %v776 = vpow.pop %v775
        %v777 = vmul.f32 %v751, 1.442695
        %v778 = vpow.pop %v777
        %v779 = vmul.f32 %v752, 1.442695
        %v780 = vpow.pop %v779
        %v781 = vmul.f32 %v753, 1.442695
        %v782 = vpow.pop %v781
        %v783 = vmul.f32 %v754, 1.442695
        %v784 = vpow.pop %v783
        %v785 = vmul.f32 %v755, 1.442695
        %v786 = vpow.pop %v785
        %v787 = vmul.f32 %v756, 1.442695
        %v788 = vpow.pop %v787
        %v789 = vadd.f32 %v758, 1.0
        %v790 = vadd.f32 %v760, 1.0
        %v791 = vadd.f32 %v762, 1.0
        %v792 = vadd.f32 %v764, 1.0
        %v793 = vadd.f32 %v766, 1.0
        %v794 = vadd.f32 %v768, 1.0
        %v795 = vadd.f32 %v770, 1.0
        %v796 = vadd.f32 %v772, 1.0
        %v797 = vadd.f32 %v774, 1.0
        %v798 = vadd.f32 %v776, 1.0
        %v799 = vadd.f32 %v778, 1.0
        %v800 = vadd.f32 %v780, 1.0
        %v801 = vadd.f32 %v782, 1.0
        %v802 = vadd.f32 %v784, 1.0
        %v803 = vadd.f32 %v786, 1.0
        %v804 = vadd.f32 %v788, 1.0
        %v805 = vrcp.pop %v789
        %v806 = vmul.f32 1.0, %v805
        %v807 = vrcp.pop %v790
        %v808 = vmul.f32 1.0, %v807
        %v809 = vrcp.pop %v791
        %v810 = vmul.f32 1.0, %v809
        %v811 = vrcp.pop %v792
        %v812 = vmul.f32 1.0, %v811
        %v813 = vrcp.pop %v793
        %v814 = vmul.f32 1.0, %v813
        %v815 = vrcp.pop %v794
        %v816 = vmul.f32 1.0, %v815
        %v817 = vrcp.pop %v795
        %v818 = vmul.f32 1.0, %v817
        %v819 = vrcp.pop %v796
        %v820 = vmul.f32 1.0, %v819
        %v821 = vrcp.pop %v797
        %v822 = vmul.f32 1.0, %v821
        %v823 = vrcp.pop %v798
        %v824 = vmul.f32 1.0, %v823
        %v825 = vrcp.pop %v799
        %v826 = vmul.f32 1.0, %v825
        %v827 = vrcp.pop %v800
        %v828 = vmul.f32 1.0, %v827
        %v829 = vrcp.pop %v801
        %v830 = vmul.f32 1.0, %v829
        %v831 = vrcp.pop %v802
        %v832 = vmul.f32 1.0, %v831
        %v833 = vrcp.pop %v803
        %v834 = vmul.f32 1.0, %v833
        %v835 = vrcp.pop %v804
        %v836 = vmul.f32 1.0, %v835
        %v837 = vld [vmem:[#allocation7] sm:$0xff]
        %v838 = vld [vmem:[#allocation7 + $0x8] sm:$0xff]
        %v839 = vld [vmem:[#allocation7 + $0x10] sm:$0xff]
        %v840 = vld [vmem:[#allocation7 + $0x18] sm:$0xff]
        %v841 = vld [vmem:[#allocation7 + $0x20] sm:$0xff]
        %v842 = vld [vmem:[#allocation7 + $0x28] sm:$0xff]
        %v843 = vld [vmem:[#allocation7 + $0x30] sm:$0xff]
        %v844 = vld [vmem:[#allocation7 + $0x38] sm:$0xff]
        %v845 = vld [vmem:[#allocation7 + $0x40] sm:$0xff]
        %v846 = vld [vmem:[#allocation7 + $0x48] sm:$0xff]
        %v847 = vld [vmem:[#allocation7 + $0x50] sm:$0xff]
        %v848 = vld [vmem:[#allocation7 + $0x58] sm:$0xff]
        %v849 = vld [vmem:[#allocation7 + $0x60] sm:$0xff]
        %v850 = vld [vmem:[#allocation7 + $0x68] sm:$0xff]
        %v851 = vld [vmem:[#allocation7 + $0x70] sm:$0xff]
        %v852 = vld [vmem:[#allocation7 + $0x78] sm:$0xff]
        %v853 = vld [vmem:[%s4] sm:$0x1]
        %v855 = vlaneseq
        %v856 = vshrl.u32 %v855, 7
        %v857 = vsub.s32 0, %v856
        %v858 = vrot.slane %v853, %v857
        %860 = vmatprep.subr.mxu0 0.0
        %861 = vmatpush1.msra.mxu0 %v837
        %862 = vmatprep.subr.mxu0 0.0
        %863 = vmatpush1.msra.mxu0 %v838
        %864 = vmatprep.subr.mxu0 0.0
        %865 = vmatpush1.msra.mxu0 %v839
        %866 = vmatprep.subr.mxu0 0.0
        %867 = vmatpush1.msra.mxu0 %v840
        %868 = vmatprep.subr.mxu0 0.0
        %869 = vmatpush1.msra.mxu0 %v841
        %870 = vmatprep.subr.mxu0 0.0
        %871 = vmatpush1.msra.mxu0 %v842
        %872 = vmatprep.subr.mxu0 0.0
        %873 = vmatpush1.msra.mxu0 %v843
        %874 = vmatprep.subr.mxu0 0.0
        %875 = vmatpush1.msra.mxu0 %v844
        %876 = vmatprep.subr.mxu0 0.0
        %877 = vmatpush1.msra.mxu0 %v845
        %878 = vmatprep.subr.mxu0 0.0
        %879 = vmatpush1.msra.mxu0 %v846
        %880 = vmatprep.subr.mxu0 0.0
        %881 = vmatpush1.msra.mxu0 %v847
        %882 = vmatprep.subr.mxu0 0.0
        %883 = vmatpush1.msra.mxu0 %v848
        %884 = vmatprep.subr.mxu0 0.0
        %885 = vmatpush1.msra.mxu0 %v849
        %886 = vmatprep.subr.mxu0 0.0
        %887 = vmatpush1.msra.mxu0 %v850
        %888 = vmatprep.subr.mxu0 0.0
        %889 = vmatpush1.msra.mxu0 %v851
        %890 = vmatprep.subr.mxu0 0.0
        %891 = vmatpush1.msra.mxu0 %v852
        %892 = vmatprep.subr.mxu0 0.0
        %893 = vmatpush1.msra.mxu0 0.0
        %894 = vmatprep.subr.mxu0 0.0
        %895 = vmatpush1.msra.mxu0 0.0
        %896 = vmatprep.subr.mxu0 0.0
        %897 = vmatpush1.msra.mxu0 0.0
        %898 = vmatprep.subr.mxu0 0.0
        %899 = vmatpush1.msra.mxu0 0.0
        %900 = vmatprep.subr.mxu0 0.0
        %901 = vmatpush1.msra.mxu0 0.0
        %902 = vmatprep.subr.mxu0 0.0
        %903 = vmatpush1.msra.mxu0 0.0
        %904 = vmatprep.subr.mxu0 0.0
        %905 = vmatpush1.msra.mxu0 0.0
        %906 = vmatprep.subr.mxu0 0.0
        %907 = vmatpush1.msra.mxu0 0.0
        %908 = vmatprep.subr.mxu0 0.0
        %909 = vmatpush1.msra.mxu0 0.0
        %910 = vmatprep.subr.mxu0 0.0
        %911 = vmatpush1.msra.mxu0 0.0
        %912 = vmatprep.subr.mxu0 0.0
        %913 = vmatpush1.msra.mxu0 0.0
        %914 = vmatprep.subr.mxu0 0.0
        %915 = vmatpush1.msra.mxu0 0.0
        %916 = vmatprep.subr.mxu0 0.0
        %917 = vmatpush1.msra.mxu0 0.0
        %918 = vmatprep.subr.mxu0 0.0
        %919 = vmatpush1.msra.mxu0 0.0
        %920 = vmatprep.subr.mxu0 0.0
        %921 = vmatpush1.msra.mxu0 0.0
        %922 = vmatprep.subr.mxu0 0.0
        %923 = vmatpush1.msra.mxu0 0.0
        %924 = vmatprep.mubr.f32.mxu0 0.0
        %925 = vmatmul.mubr.f32.gmra.mrb[0].mxu0 %v806
        %v926 = vpop.f32.mrb[0].mxu0
        %v927 = vadd.f32 %v858, %v926
        %v928 = vpop.f32.mrb[0].mxu0
        %929 = vmatprep.mubr.f32.mxu0 0.0
        %930 = vmatmul.mubr.f32.gmra.mrb[0].mxu0 %v808
        %v931 = vpop.f32.mrb[0].mxu0
        %v932 = vadd.f32 %v858, %v931
        %v933 = vpop.f32.mrb[0].mxu0
        %934 = vmatprep.mubr.f32.mxu0 0.0
        %935 = vmatmul.mubr.f32.gmra.mrb[0].mxu0 %v810
        %v936 = vpop.f32.mrb[0].mxu0
        %v937 = vadd.f32 %v858, %v936
        %v938 = vpop.f32.mrb[0].mxu0
        %939 = vmatprep.mubr.f32.mxu0 0.0
        %940 = vmatmul.mubr.f32.gmra.mrb[0].mxu0 %v812
        %v941 = vpop.f32.mrb[0].mxu0
        %v942 = vadd.f32 %v858, %v941
        %v943 = vpop.f32.mrb[0].mxu0
        %944 = vmatprep.mubr.f32.mxu0 0.0
        %945 = vmatmul.mubr.f32.gmra.mrb[0].mxu0 %v814
        %v946 = vpop.f32.mrb[0].mxu0
        %v947 = vadd.f32 %v858, %v946
        %v948 = vpop.f32.mrb[0].mxu0
        %949 = vmatprep.mubr.f32.mxu0 0.0
        %950 = vmatmul.mubr.f32.gmra.mrb[0].mxu0 %v816
        %v951 = vpop.f32.mrb[0].mxu0
        %v952 = vadd.f32 %v858, %v951
        %v953 = vpop.f32.mrb[0].mxu0
        %954 = vmatprep.mubr.f32.mxu0 0.0
        %955 = vmatmul.mubr.f32.gmra.mrb[0].mxu0 %v818
        %v956 = vpop.f32.mrb[0].mxu0
        %v957 = vadd.f32 %v858, %v956
        %v958 = vpop.f32.mrb[0].mxu0
        %959 = vmatprep.mubr.f32.mxu0 0.0
        %960 = vmatmul.mubr.f32.gmra.mrb[0].mxu0 %v820
        %v961 = vpop.f32.mrb[0].mxu0
        %v962 = vadd.f32 %v858, %v961
        %v963 = vpop.f32.mrb[0].mxu0
        %964 = vmatprep.mubr.f32.mxu0 0.0
        %965 = vmatmul.mubr.f32.gmra.mrb[0].mxu0 %v822
        %v966 = vpop.f32.mrb[0].mxu0
        %v967 = vadd.f32 %v858, %v966
        %v968 = vpop.f32.mrb[0].mxu0
        %969 = vmatprep.mubr.f32.mxu0 0.0
        %970 = vmatmul.mubr.f32.gmra.mrb[0].mxu0 %v824
        %v971 = vpop.f32.mrb[0].mxu0
        %v972 = vadd.f32 %v858, %v971
        %v973 = vpop.f32.mrb[0].mxu0
        %974 = vmatprep.mubr.f32.mxu0 0.0
        %975 = vmatmul.mubr.f32.gmra.mrb[0].mxu0 %v826
        %v976 = vpop.f32.mrb[0].mxu0
        %v977 = vadd.f32 %v858, %v976
        %v978 = vpop.f32.mrb[0].mxu0
        %979 = vmatprep.mubr.f32.mxu0 0.0
        %980 = vmatmul.mubr.f32.gmra.mrb[0].mxu0 %v828
        %v981 = vpop.f32.mrb[0].mxu0
        %v982 = vadd.f32 %v858, %v981
        %v983 = vpop.f32.mrb[0].mxu0
        %984 = vmatprep.mubr.f32.mxu0 0.0
        %985 = vmatmul.mubr.f32.gmra.mrb[0].mxu0 %v830
        %v986 = vpop.f32.mrb[0].mxu0
        %v987 = vadd.f32 %v858, %v986
        %v988 = vpop.f32.mrb[0].mxu0
        %989 = vmatprep.mubr.f32.mxu0 0.0
        %990 = vmatmul.mubr.f32.gmra.mrb[0].mxu0 %v832
        %v991 = vpop.f32.mrb[0].mxu0
        %v992 = vadd.f32 %v858, %v991
        %v993 = vpop.f32.mrb[0].mxu0
        %994 = vmatprep.mubr.f32.mxu0 0.0
        %995 = vmatmul.mubr.f32.gmra.mrb[0].mxu0 %v834
        %v996 = vpop.f32.mrb[0].mxu0
        %v997 = vadd.f32 %v858, %v996
        %v998 = vpop.f32.mrb[0].mxu0
        %999 = vmatprep.mubr.f32.mxu0 0.0
        %1000 = vmatmul.mubr.f32.gmra.mrb[0].mxu0 %v836
        %v1001 = vpop.f32.mrb[0].mxu0
        %v1002 = vadd.f32 %v858, %v1001
        %v1003 = vpop.f32.mrb[0].mxu0
        %1004 = vdwg.mxu0
        %v1005 = vxor.u32 %v927, 2147483648
        %v1006 = vxor.u32 %v932, 2147483648
        %v1007 = vxor.u32 %v937, 2147483648
        %v1008 = vxor.u32 %v942, 2147483648
        %v1009 = vxor.u32 %v947, 2147483648
        %v1010 = vxor.u32 %v952, 2147483648
        %v1011 = vxor.u32 %v957, 2147483648
        %v1012 = vxor.u32 %v962, 2147483648
        %v1013 = vxor.u32 %v967, 2147483648
        %v1014 = vxor.u32 %v972, 2147483648
        %v1015 = vxor.u32 %v977, 2147483648
        %v1016 = vxor.u32 %v982, 2147483648
        %v1017 = vxor.u32 %v987, 2147483648
        %v1018 = vxor.u32 %v992, 2147483648
        %v1019 = vxor.u32 %v997, 2147483648
        %v1020 = vxor.u32 %v1002, 2147483648
        %v1021 = vmul.f32 %v1005, 1.442695
        %v1022 = vpow.pop %v1021
        %v1023 = vmul.f32 %v1006, 1.442695
        %v1024 = vpow.pop %v1023
        %v1025 = vmul.f32 %v1007, 1.442695
        %v1026 = vpow.pop %v1025
        %v1027 = vmul.f32 %v1008, 1.442695
        %v1028 = vpow.pop %v1027
        %v1029 = vmul.f32 %v1009, 1.442695
        %v1030 = vpow.pop %v1029
        %v1031 = vmul.f32 %v1010, 1.442695
        %v1032 = vpow.pop %v1031
        %v1033 = vmul.f32 %v1011, 1.442695
        %v1034 = vpow.pop %v1033
        %v1035 = vmul.f32 %v1012, 1.442695
        %v1036 = vpow.pop %v1035
        %v1037 = vmul.f32 %v1013, 1.442695
        %v1038 = vpow.pop %v1037
        %v1039 = vmul.f32 %v1014, 1.442695
        %v1040 = vpow.pop %v1039
        %v1041 = vmul.f32 %v1015, 1.442695
        %v1042 = vpow.pop %v1041
        %v1043 = vmul.f32 %v1016, 1.442695
        %v1044 = vpow.pop %v1043
        %v1045 = vmul.f32 %v1017, 1.442695
        %v1046 = vpow.pop %v1045
        %v1047 = vmul.f32 %v1018, 1.442695
        %v1048 = vpow.pop %v1047
        %v1049 = vmul.f32 %v1019, 1.442695
        %v1050 = vpow.pop %v1049
        %v1051 = vmul.f32 %v1020, 1.442695
        %v1052 = vpow.pop %v1051
        %v1053 = vadd.f32 %v1022, 1.0
        %v1054 = vadd.f32 %v1024, 1.0
        %v1055 = vadd.f32 %v1026, 1.0
        %v1056 = vadd.f32 %v1028, 1.0
        %v1057 = vadd.f32 %v1030, 1.0
        %v1058 = vadd.f32 %v1032, 1.0
        %v1059 = vadd.f32 %v1034, 1.0
        %v1060 = vadd.f32 %v1036, 1.0
        %v1061 = vadd.f32 %v1038, 1.0
        %v1062 = vadd.f32 %v1040, 1.0
        %v1063 = vadd.f32 %v1042, 1.0
        %v1064 = vadd.f32 %v1044, 1.0
        %v1065 = vadd.f32 %v1046, 1.0
        %v1066 = vadd.f32 %v1048, 1.0
        %v1067 = vadd.f32 %v1050, 1.0
        %v1068 = vadd.f32 %v1052, 1.0
        %v1069 = vrcp.pop %v1053
        %v1070 = vmul.f32 1.0, %v1069
        %v1071 = vrcp.pop %v1054
        %v1072 = vmul.f32 1.0, %v1071
        %v1073 = vrcp.pop %v1055
        %v1074 = vmul.f32 1.0, %v1073
        %v1075 = vrcp.pop %v1056
        %v1076 = vmul.f32 1.0, %v1075
        %v1077 = vrcp.pop %v1057
        %v1078 = vmul.f32 1.0, %v1077
        %v1079 = vrcp.pop %v1058
        %v1080 = vmul.f32 1.0, %v1079
        %v1081 = vrcp.pop %v1059
        %v1082 = vmul.f32 1.0, %v1081
        %v1083 = vrcp.pop %v1060
        %v1084 = vmul.f32 1.0, %v1083
        %v1085 = vrcp.pop %v1061
        %v1086 = vmul.f32 1.0, %v1085
        %v1087 = vrcp.pop %v1062
        %v1088 = vmul.f32 1.0, %v1087
        %v1089 = vrcp.pop %v1063
        %v1090 = vmul.f32 1.0, %v1089
        %v1091 = vrcp.pop %v1064
        %v1092 = vmul.f32 1.0, %v1091
        %v1093 = vrcp.pop %v1065
        %v1094 = vmul.f32 1.0, %v1093
        %v1095 = vrcp.pop %v1066
        %v1096 = vmul.f32 1.0, %v1095
        %v1097 = vrcp.pop %v1067
        %v1098 = vmul.f32 1.0, %v1097
        %v1099 = vrcp.pop %v1068
        %v1100 = vmul.f32 1.0, %v1099
        %v1101 = vld [vmem:[#allocation8] sm:$0xff]
        %v1102 = vld [vmem:[#allocation8 + $0x8] sm:$0xff]
        %v1103 = vld [vmem:[#allocation8 + $0x10] sm:$0xff]
        %v1104 = vld [vmem:[#allocation8 + $0x18] sm:$0xff]
        %v1105 = vld [vmem:[#allocation8 + $0x20] sm:$0xff]
        %v1106 = vld [vmem:[#allocation8 + $0x28] sm:$0xff]
        %v1107 = vld [vmem:[#allocation8 + $0x30] sm:$0xff]
        %v1108 = vld [vmem:[#allocation8 + $0x38] sm:$0xff]
        %v1109 = vld [vmem:[#allocation8 + $0x40] sm:$0xff]
        %v1110 = vld [vmem:[#allocation8 + $0x48] sm:$0xff]
        %v1111 = vld [vmem:[#allocation8 + $0x50] sm:$0xff]
        %v1112 = vld [vmem:[#allocation8 + $0x58] sm:$0xff]
        %v1113 = vld [vmem:[#allocation8 + $0x60] sm:$0xff]
        %v1114 = vld [vmem:[#allocation8 + $0x68] sm:$0xff]
        %v1115 = vld [vmem:[#allocation8 + $0x70] sm:$0xff]
        %v1116 = vld [vmem:[#allocation8 + $0x78] sm:$0xff]
        %v1117 = vld [vmem:[%s6] sm:$0x1]
        %v1119 = vlaneseq
        %v1120 = vshrl.u32 %v1119, 7
        %v1121 = vsub.s32 0, %v1120
        %v1122 = vrot.slane %v1117, %v1121
        %1124 = vmatprep.subr.mxu0 0.0
        %1125 = vmatpush1.msra.mxu0 %v1101
        %1126 = vmatprep.subr.mxu0 0.0
        %1127 = vmatpush1.msra.mxu0 %v1102
        %1128 = vmatprep.subr.mxu0 0.0
        %1129 = vmatpush1.msra.mxu0 %v1103
        %1130 = vmatprep.subr.mxu0 0.0
        %1131 = vmatpush1.msra.mxu0 %v1104
        %1132 = vmatprep.subr.mxu0 0.0
        %1133 = vmatpush1.msra.mxu0 %v1105
        %1134 = vmatprep.subr.mxu0 0.0
        %1135 = vmatpush1.msra.mxu0 %v1106
        %1136 = vmatprep.subr.mxu0 0.0
        %1137 = vmatpush1.msra.mxu0 %v1107
        %1138 = vmatprep.subr.mxu0 0.0
        %1139 = vmatpush1.msra.mxu0 %v1108
        %1140 = vmatprep.subr.mxu0 0.0
        %1141 = vmatpush1.msra.mxu0 %v1109
        %1142 = vmatprep.subr.mxu0 0.0
        %1143 = vmatpush1.msra.mxu0 %v1110
        %1144 = vmatprep.subr.mxu0 0.0
        %1145 = vmatpush1.msra.mxu0 %v1111
        %1146 = vmatprep.subr.mxu0 0.0
        %1147 = vmatpush1.msra.mxu0 %v1112
        %1148 = vmatprep.subr.mxu0 0.0
        %1149 = vmatpush1.msra.mxu0 %v1113
        %1150 = vmatprep.subr.mxu0 0.0
        %1151 = vmatpush1.msra.mxu0 %v1114
        %1152 = vmatprep.subr.mxu0 0.0
        %1153 = vmatpush1.msra.mxu0 %v1115
        %1154 = vmatprep.subr.mxu0 0.0
        %1155 = vmatpush1.msra.mxu0 %v1116
        %1156 = vmatprep.subr.mxu0 0.0
        %1157 = vmatpush1.msra.mxu0 0.0
        %1158 = vmatprep.subr.mxu0 0.0
        %1159 = vmatpush1.msra.mxu0 0.0
        %1160 = vmatprep.subr.mxu0 0.0
        %1161 = vmatpush1.msra.mxu0 0.0
        %1162 = vmatprep.subr.mxu0 0.0
        %1163 = vmatpush1.msra.mxu0 0.0
        %1164 = vmatprep.subr.mxu0 0.0
        %1165 = vmatpush1.msra.mxu0 0.0
        %1166 = vmatprep.subr.mxu0 0.0
        %1167 = vmatpush1.msra.mxu0 0.0
        %1168 = vmatprep.subr.mxu0 0.0
        %1169 = vmatpush1.msra.mxu0 0.0
        %1170 = vmatprep.subr.mxu0 0.0
        %1171 = vmatpush1.msra.mxu0 0.0
        %1172 = vmatprep.subr.mxu0 0.0
        %1173 = vmatpush1.msra.mxu0 0.0
        %1174 = vmatprep.subr.mxu0 0.0
        %1175 = vmatpush1.msra.mxu0 0.0
        %1176 = vmatprep.subr.mxu0 0.0
        %1177 = vmatpush1.msra.mxu0 0.0
        %1178 = vmatprep.subr.mxu0 0.0
        %1179 = vmatpush1.msra.mxu0 0.0
        %1180 = vmatprep.subr.mxu0 0.0
        %1181 = vmatpush1.msra.mxu0 0.0
        %1182 = vmatprep.subr.mxu0 0.0
        %1183 = vmatpush1.msra.mxu0 0.0
        %1184 = vmatprep.subr.mxu0 0.0
        %1185 = vmatpush1.msra.mxu0 0.0
        %1186 = vmatprep.subr.mxu0 0.0
        %1187 = vmatpush1.msra.mxu0 0.0
        %1188 = vmatprep.mubr.f32.mxu0 0.0
        %1189 = vmatmul.mubr.f32.gmra.mrb[0].mxu0 %v1070
        %v1190 = vpop.f32.mrb[0].mxu0
        %v1191 = vadd.f32 %v1122, %v1190
        %v1192 = vpop.f32.mrb[0].mxu0
        %1193 = vmatprep.mubr.f32.mxu0 0.0
        %1194 = vmatmul.mubr.f32.gmra.mrb[0].mxu0 %v1072
        %v1195 = vpop.f32.mrb[0].mxu0
        %v1196 = vadd.f32 %v1122, %v1195
        %v1197 = vpop.f32.mrb[0].mxu0
        %1198 = vmatprep.mubr.f32.mxu0 0.0
        %1199 = vmatmul.mubr.f32.gmra.mrb[0].mxu0 %v1074
        %v1200 = vpop.f32.mrb[0].mxu0
        %v1201 = vadd.f32 %v1122, %v1200
        %v1202 = vpop.f32.mrb[0].mxu0
        %1203 = vmatprep.mubr.f32.mxu0 0.0
        %1204 = vmatmul.mubr.f32.gmra.mrb[0].mxu0 %v1076
        %v1205 = vpop.f32.mrb[0].mxu0
        %v1206 = vadd.f32 %v1122, %v1205
        %v1207 = vpop.f32.mrb[0].mxu0
        %1208 = vmatprep.mubr.f32.mxu0 0.0
        %1209 = vmatmul.mubr.f32.gmra.mrb[0].mxu0 %v1078
        %v1210 = vpop.f32.mrb[0].mxu0
        %v1211 = vadd.f32 %v1122, %v1210
        %v1212 = vpop.f32.mrb[0].mxu0
        %1213 = vmatprep.mubr.f32.mxu0 0.0
        %1214 = vmatmul.mubr.f32.gmra.mrb[0].mxu0 %v1080
        %v1215 = vpop.f32.mrb[0].mxu0
        %v1216 = vadd.f32 %v1122, %v1215
        %v1217 = vpop.f32.mrb[0].mxu0
        %1218 = vmatprep.mubr.f32.mxu0 0.0
        %1219 = vmatmul.mubr.f32.gmra.mrb[0].mxu0 %v1082
        %v1220 = vpop.f32.mrb[0].mxu0
        %v1221 = vadd.f32 %v1122, %v1220
        %v1222 = vpop.f32.mrb[0].mxu0
        %1223 = vmatprep.mubr.f32.mxu0 0.0
        %1224 = vmatmul.mubr.f32.gmra.mrb[0].mxu0 %v1084
        %v1225 = vpop.f32.mrb[0].mxu0
        %v1226 = vadd.f32 %v1122, %v1225
        %v1227 = vpop.f32.mrb[0].mxu0
        %1228 = vmatprep.mubr.f32.mxu0 0.0
        %1229 = vmatmul.mubr.f32.gmra.mrb[0].mxu0 %v1086
        %v1230 = vpop.f32.mrb[0].mxu0
        %v1231 = vadd.f32 %v1122, %v1230
        %v1232 = vpop.f32.mrb[0].mxu0
        %1233 = vmatprep.mubr.f32.mxu0 0.0
        %1234 = vmatmul.mubr.f32.gmra.mrb[0].mxu0 %v1088
        %v1235 = vpop.f32.mrb[0].mxu0
        %v1236 = vadd.f32 %v1122, %v1235
        %v1237 = vpop.f32.mrb[0].mxu0
        %1238 = vmatprep.mubr.f32.mxu0 0.0
        %1239 = vmatmul.mubr.f32.gmra.mrb[0].mxu0 %v1090
        %v1240 = vpop.f32.mrb[0].mxu0
        %v1241 = vadd.f32 %v1122, %v1240
        %v1242 = vpop.f32.mrb[0].mxu0
        %1243 = vmatprep.mubr.f32.mxu0 0.0
        %1244 = vmatmul.mubr.f32.gmra.mrb[0].mxu0 %v1092
        %v1245 = vpop.f32.mrb[0].mxu0
        %v1246 = vadd.f32 %v1122, %v1245
        %v1247 = vpop.f32.mrb[0].mxu0
        %1248 = vmatprep.mubr.f32.mxu0 0.0
        %1249 = vmatmul.mubr.f32.gmra.mrb[0].mxu0 %v1094
        %v1250 = vpop.f32.mrb[0].mxu0
        %v1251 = vadd.f32 %v1122, %v1250
        %v1252 = vpop.f32.mrb[0].mxu0
        %1253 = vmatprep.mubr.f32.mxu0 0.0
        %1254 = vmatmul.mubr.f32.gmra.mrb[0].mxu0 %v1096
        %v1255 = vpop.f32.mrb[0].mxu0
        %v1256 = vadd.f32 %v1122, %v1255
        %v1257 = vpop.f32.mrb[0].mxu0
        %1258 = vmatprep.mubr.f32.mxu0 0.0
        %1259 = vmatmul.mubr.f32.gmra.mrb[0].mxu0 %v1098
        %v1260 = vpop.f32.mrb[0].mxu0
        %v1261 = vadd.f32 %v1122, %v1260
        %v1262 = vpop.f32.mrb[0].mxu0
        %1263 = vmatprep.mubr.f32.mxu0 0.0
        %1264 = vmatmul.mubr.f32.gmra.mrb[0].mxu0 %v1100
        %v1265 = vpop.f32.mrb[0].mxu0
        %v1266 = vadd.f32 %v1122, %v1265
        %v1267 = vpop.f32.mrb[0].mxu0
        %1268 = vdwg.mxu0
        %v1269 = vxor.u32 %v1191, 2147483648
        %v1270 = vxor.u32 %v1196, 2147483648
        %v1271 = vxor.u32 %v1201, 2147483648
        %v1272 = vxor.u32 %v1206, 2147483648
        %v1273 = vxor.u32 %v1211, 2147483648
        %v1274 = vxor.u32 %v1216, 2147483648
        %v1275 = vxor.u32 %v1221, 2147483648
        %v1276 = vxor.u32 %v1226, 2147483648
        %v1277 = vxor.u32 %v1231, 2147483648
        %v1278 = vxor.u32 %v1236, 2147483648
        %v1279 = vxor.u32 %v1241, 2147483648
        %v1280 = vxor.u32 %v1246, 2147483648
        %v1281 = vxor.u32 %v1251, 2147483648
        %v1282 = vxor.u32 %v1256, 2147483648
        %v1283 = vxor.u32 %v1261, 2147483648
        %v1284 = vxor.u32 %v1266, 2147483648
        %v1285 = vmul.f32 %v1269, 1.442695
        %v1286 = vpow.pop %v1285
        %v1287 = vmul.f32 %v1270, 1.442695
        %v1288 = vpow.pop %v1287
        %v1289 = vmul.f32 %v1271, 1.442695
        %v1290 = vpow.pop %v1289
        %v1291 = vmul.f32 %v1272, 1.442695
        %v1292 = vpow.pop %v1291
        %v1293 = vmul.f32 %v1273, 1.442695
        %v1294 = vpow.pop %v1293
        %v1295 = vmul.f32 %v1274, 1.442695
        %v1296 = vpow.pop %v1295
        %v1297 = vmul.f32 %v1275, 1.442695
        %v1298 = vpow.pop %v1297
        %v1299 = vmul.f32 %v1276, 1.442695
        %v1300 = vpow.pop %v1299
        %v1301 = vmul.f32 %v1277, 1.442695
        %v1302 = vpow.pop %v1301
        %v1303 = vmul.f32 %v1278, 1.442695
        %v1304 = vpow.pop %v1303
        %v1305 = vmul.f32 %v1279, 1.442695
        %v1306 = vpow.pop %v1305
        %v1307 = vmul.f32 %v1280, 1.442695
        %v1308 = vpow.pop %v1307
        %v1309 = vmul.f32 %v1281, 1.442695
        %v1310 = vpow.pop %v1309
        %v1311 = vmul.f32 %v1282, 1.442695
        %v1312 = vpow.pop %v1311
        %v1313 = vmul.f32 %v1283, 1.442695
        %v1314 = vpow.pop %v1313
        %v1315 = vmul.f32 %v1284, 1.442695
        %v1316 = vpow.pop %v1315
        %v1317 = vadd.f32 %v1286, 1.0
        %v1318 = vadd.f32 %v1288, 1.0
        %v1319 = vadd.f32 %v1290, 1.0
        %v1320 = vadd.f32 %v1292, 1.0
        %v1321 = vadd.f32 %v1294, 1.0
        %v1322 = vadd.f32 %v1296, 1.0
        %v1323 = vadd.f32 %v1298, 1.0
        %v1324 = vadd.f32 %v1300, 1.0
        %v1325 = vadd.f32 %v1302, 1.0
        %v1326 = vadd.f32 %v1304, 1.0
        %v1327 = vadd.f32 %v1306, 1.0
        %v1328 = vadd.f32 %v1308, 1.0
        %v1329 = vadd.f32 %v1310, 1.0
        %v1330 = vadd.f32 %v1312, 1.0
        %v1331 = vadd.f32 %v1314, 1.0
        %v1332 = vadd.f32 %v1316, 1.0
        %v1333 = vrcp.pop %v1317
        %v1334 = vmul.f32 1.0, %v1333
        %v1335 = vrcp.pop %v1318
        %v1336 = vmul.f32 1.0, %v1335
        %v1337 = vrcp.pop %v1319
        %v1338 = vmul.f32 1.0, %v1337
        %v1339 = vrcp.pop %v1320
        %v1340 = vmul.f32 1.0, %v1339
        %v1341 = vrcp.pop %v1321
        %v1342 = vmul.f32 1.0, %v1341
        %v1343 = vrcp.pop %v1322
        %v1344 = vmul.f32 1.0, %v1343
        %v1345 = vrcp.pop %v1323
        %v1346 = vmul.f32 1.0, %v1345
        %v1347 = vrcp.pop %v1324
        %v1348 = vmul.f32 1.0, %v1347
        %v1349 = vrcp.pop %v1325
        %v1350 = vmul.f32 1.0, %v1349
        %v1351 = vrcp.pop %v1326
        %v1352 = vmul.f32 1.0, %v1351
        %v1353 = vrcp.pop %v1327
        %v1354 = vmul.f32 1.0, %v1353
        %v1355 = vrcp.pop %v1328
        %v1356 = vmul.f32 1.0, %v1355
        %v1357 = vrcp.pop %v1329
        %v1358 = vmul.f32 1.0, %v1357
        %v1359 = vrcp.pop %v1330
        %v1360 = vmul.f32 1.0, %v1359
        %v1361 = vrcp.pop %v1331
        %v1362 = vmul.f32 1.0, %v1361
        %v1363 = vrcp.pop %v1332
        %v1364 = vmul.f32 1.0, %v1363
        %v1365 = vpack.c.bf16 %v1336, %v1334
        %v1366 = vpack.c.bf16 %v1340, %v1338
        %v1367 = vpack.c.bf16 %v1344, %v1342
        %v1368 = vpack.c.bf16 %v1348, %v1346
        %v1369 = vpack.c.bf16 %v1352, %v1350
        %v1370 = vpack.c.bf16 %v1356, %v1354
        %v1371 = vpack.c.bf16 %v1360, %v1358
        %v1372 = vpack.c.bf16 %v1364, %v1362
        %v1373 = vld [vmem:[#allocation10] sm:$0xff]
        %v1374 = vld [vmem:[#allocation10 + $0x8] sm:$0xff]
        %v1375 = vld [vmem:[#allocation10 + $0x10] sm:$0xff]
        %v1376 = vld [vmem:[#allocation10 + $0x18] sm:$0xff]
        %v1377 = vld [vmem:[#allocation10 + $0x20] sm:$0xff]
        %v1378 = vld [vmem:[#allocation10 + $0x28] sm:$0xff]
        %v1379 = vld [vmem:[#allocation10 + $0x30] sm:$0xff]
        %v1380 = vld [vmem:[#allocation10 + $0x38] sm:$0xff]
        %v1381 = vld [vmem:[#allocation10 + $0x40] sm:$0xff]
        %v1382 = vld [vmem:[#allocation10 + $0x48] sm:$0xff]
        %v1383 = vld [vmem:[#allocation10 + $0x50] sm:$0xff]
        %v1384 = vld [vmem:[#allocation10 + $0x58] sm:$0xff]
        %v1385 = vld [vmem:[#allocation10 + $0x60] sm:$0xff]
        %v1386 = vld [vmem:[#allocation10 + $0x68] sm:$0xff]
        %v1387 = vld [vmem:[#allocation10 + $0x70] sm:$0xff]
        %v1388 = vld [vmem:[#allocation10 + $0x78] sm:$0xff]
        %v1389 = vld [vmem:[%s8] sm:$0x3]
        %v1391 = vlaneseq
        %v1392 = vshrl.u32 %v1391, 7
        %v1393 = vsub.s32 0, %v1392
        %v1394 = vrot.slane %v1389, %v1393
        %v1395 = vlaneseq
        %v1396 = vshrl.u32 %v1395, 7
        %v1397 = vsub.s32 1, %v1396
        %v1398 = vrot.slane %v1389, %v1397
        %v1417 = vunpack.c.l.b16 %v1373
        %v1418 = vunpack.c.h.b16 %v1373
        %v1419 = vunpack.c.l.b16 %v1374
        %v1420 = vunpack.c.h.b16 %v1374
        %v1421 = vunpack.c.l.b16 %v1375
        %v1422 = vunpack.c.h.b16 %v1375
        %v1423 = vunpack.c.l.b16 %v1376
        %v1424 = vunpack.c.h.b16 %v1376
        %v1425 = vunpack.c.l.b16 %v1377
        %v1426 = vunpack.c.h.b16 %v1377
        %v1427 = vunpack.c.l.b16 %v1378
        %v1428 = vunpack.c.h.b16 %v1378
        %v1429 = vunpack.c.l.b16 %v1379
        %v1430 = vunpack.c.h.b16 %v1379
        %v1431 = vunpack.c.l.b16 %v1380
        %v1432 = vunpack.c.h.b16 %v1380
        %v1433 = vunpack.c.l.b16 %v1381
        %v1434 = vunpack.c.h.b16 %v1381
        %v1435 = vunpack.c.l.b16 %v1382
        %v1436 = vunpack.c.h.b16 %v1382
        %v1437 = vunpack.c.l.b16 %v1383
        %v1438 = vunpack.c.h.b16 %v1383
        %v1439 = vunpack.c.l.b16 %v1384
        %v1440 = vunpack.c.h.b16 %v1384
        %v1441 = vunpack.c.l.b16 %v1385
        %v1442 = vunpack.c.h.b16 %v1385
        %v1443 = vunpack.c.l.b16 %v1386
        %v1444 = vunpack.c.h.b16 %v1386
        %v1445 = vunpack.c.l.b16 %v1387
        %v1446 = vunpack.c.h.b16 %v1387
        %v1447 = vunpack.c.l.b16 %v1388
        %v1448 = vunpack.c.h.b16 %v1388
        %v1449 = vpack.c.b16 %v1419, %v1417
        %v1450 = vpack.c.b16 %v1420, %v1418
        %v1451 = vpack.c.b16 %v1423, %v1421
        %v1452 = vpack.c.b16 %v1424, %v1422
        %v1453 = vpack.c.b16 %v1427, %v1425
        %v1454 = vpack.c.b16 %v1428, %v1426
        %v1455 = vpack.c.b16 %v1431, %v1429
        %v1456 = vpack.c.b16 %v1432, %v1430
        %v1457 = vpack.c.b16 %v1435, %v1433
        %v1458 = vpack.c.b16 %v1436, %v1434
        %v1459 = vpack.c.b16 %v1439, %v1437
        %v1460 = vpack.c.b16 %v1440, %v1438
        %v1461 = vpack.c.b16 %v1443, %v1441
        %v1462 = vpack.c.b16 %v1444, %v1442
        %v1463 = vpack.c.b16 %v1447, %v1445
        %v1464 = vpack.c.b16 %v1448, %v1446
        %1481 = vmatprep.subr.bf16.mxu0 %v1450
        %1482 = vmatpush1.bf16.msra.mxu0 %v1449
        %1483 = vmatprep.subr.bf16.mxu0 %v1452
        %1484 = vmatpush1.bf16.msra.mxu0 %v1451
        %1485 = vmatprep.subr.bf16.mxu0 %v1454
        %1486 = vmatpush1.bf16.msra.mxu0 %v1453
        %1487 = vmatprep.subr.bf16.mxu0 %v1456
        %1488 = vmatpush1.bf16.msra.mxu0 %v1455
        %1489 = vmatprep.subr.bf16.mxu0 %v1458
        %1490 = vmatpush1.bf16.msra.mxu0 %v1457
        %1491 = vmatprep.subr.bf16.mxu0 %v1460
        %1492 = vmatpush1.bf16.msra.mxu0 %v1459
        %1493 = vmatprep.subr.bf16.mxu0 %v1462
        %1494 = vmatpush1.bf16.msra.mxu0 %v1461
        %1495 = vmatprep.subr.bf16.mxu0 %v1464
        %1496 = vmatpush1.bf16.msra.mxu0 %v1463
        %1497 = vmatprep.subr.bf16.mxu0 0
        %1498 = vmatpush1.bf16.msra.mxu0 0
        %1499 = vmatprep.subr.bf16.mxu0 0
        %1500 = vmatpush1.bf16.msra.mxu0 0
        %1501 = vmatprep.subr.bf16.mxu0 0
        %1502 = vmatpush1.bf16.msra.mxu0 0
        %1503 = vmatprep.subr.bf16.mxu0 0
        %1504 = vmatpush1.bf16.msra.mxu0 0
        %1505 = vmatprep.subr.bf16.mxu0 0
        %1506 = vmatpush1.bf16.msra.mxu0 0
        %1507 = vmatprep.subr.bf16.mxu0 0
        %1508 = vmatpush1.bf16.msra.mxu0 0
        %1509 = vmatprep.subr.bf16.mxu0 0
        %1510 = vmatpush1.bf16.msra.mxu0 0
        %1511 = vmatprep.subr.bf16.mxu0 0
        %1512 = vmatpush1.bf16.msra.mxu0 0
        %1513 = vmatprep.mubr.bf16.mxu0 0
        %1514 = vmatmul.mubr.bf16.gmra.mrb[0].mxu0 %v1365
        %v1515 = vpop.f32.mrb[0].mxu0
        %v1516 = vadd.f32 %v1394, %v1515
        %v1517 = vpop.f32.mrb[0].mxu0
        %v1518 = vadd.f32 %v1398, %v1517
        %v1519 = vpop.f32.mrb[0].mxu0
        %v1520 = vadd.f32 %v1394, %v1519
        %v1521 = vpop.f32.mrb[0].mxu0
        %v1522 = vadd.f32 %v1398, %v1521
        %1523 = vmatprep.mubr.bf16.mxu0 0
        %1524 = vmatmul.mubr.bf16.gmra.mrb[0].mxu0 %v1366
        %v1525 = vpop.f32.mrb[0].mxu0
        %v1526 = vadd.f32 %v1394, %v1525
        %v1527 = vpop.f32.mrb[0].mxu0
        %v1528 = vadd.f32 %v1398, %v1527
        %v1529 = vpop.f32.mrb[0].mxu0
        %v1530 = vadd.f32 %v1394, %v1529
        %v1531 = vpop.f32.mrb[0].mxu0
        %v1532 = vadd.f32 %v1398, %v1531
        %1533 = vmatprep.mubr.bf16.mxu0 0
        %1534 = vmatmul.mubr.bf16.gmra.mrb[0].mxu0 %v1367
        %v1535 = vpop.f32.mrb[0].mxu0
        %v1536 = vadd.f32 %v1394, %v1535
        %v1537 = vpop.f32.mrb[0].mxu0
        %v1538 = vadd.f32 %v1398, %v1537
        %v1539 = vpop.f32.mrb[0].mxu0
        %v1540 = vadd.f32 %v1394, %v1539
        %v1541 = vpop.f32.mrb[0].mxu0
        %v1542 = vadd.f32 %v1398, %v1541
        %1543 = vmatprep.mubr.bf16.mxu0 0
        %1544 = vmatmul.mubr.bf16.gmra.mrb[0].mxu0 %v1368
        %v1545 = vpop.f32.mrb[0].mxu0
        %v1546 = vadd.f32 %v1394, %v1545
        %v1547 = vpop.f32.mrb[0].mxu0
        %v1548 = vadd.f32 %v1398, %v1547
        %v1549 = vpop.f32.mrb[0].mxu0
        %v1550 = vadd.f32 %v1394, %v1549
        %v1551 = vpop.f32.mrb[0].mxu0
        %v1552 = vadd.f32 %v1398, %v1551
        %1553 = vmatprep.mubr.bf16.mxu0 0
        %1554 = vmatmul.mubr.bf16.gmra.mrb[0].mxu0 %v1369
        %v1555 = vpop.f32.mrb[0].mxu0
        %v1556 = vadd.f32 %v1394, %v1555
        %v1557 = vpop.f32.mrb[0].mxu0
        %v1558 = vadd.f32 %v1398, %v1557
        %v1559 = vpop.f32.mrb[0].mxu0
        %v1560 = vadd.f32 %v1394, %v1559
        %v1561 = vpop.f32.mrb[0].mxu0
        %v1562 = vadd.f32 %v1398, %v1561
        %1563 = vmatprep.mubr.bf16.mxu0 0
        %1564 = vmatmul.mubr.bf16.gmra.mrb[0].mxu0 %v1370
        %v1565 = vpop.f32.mrb[0].mxu0
        %v1566 = vadd.f32 %v1394, %v1565
        %v1567 = vpop.f32.mrb[0].mxu0
        %v1568 = vadd.f32 %v1398, %v1567
        %v1569 = vpop.f32.mrb[0].mxu0
        %v1570 = vadd.f32 %v1394, %v1569
        %v1571 = vpop.f32.mrb[0].mxu0
        %v1572 = vadd.f32 %v1398, %v1571
        %1573 = vmatprep.mubr.bf16.mxu0 0
        %1574 = vmatmul.mubr.bf16.gmra.mrb[0].mxu0 %v1371
        %v1575 = vpop.f32.mrb[0].mxu0
        %v1576 = vadd.f32 %v1394, %v1575
        %v1577 = vpop.f32.mrb[0].mxu0
        %v1578 = vadd.f32 %v1398, %v1577
        %v1579 = vpop.f32.mrb[0].mxu0
        %v1580 = vadd.f32 %v1394, %v1579
        %v1581 = vpop.f32.mrb[0].mxu0
        %v1582 = vadd.f32 %v1398, %v1581
        %1583 = vmatprep.mubr.bf16.mxu0 0
        %1584 = vmatmul.mubr.bf16.gmra.mrb[0].mxu0 %v1372
        %v1585 = vpop.f32.mrb[0].mxu0
        %v1586 = vadd.f32 %v1394, %v1585
        %v1587 = vpop.f32.mrb[0].mxu0
        %v1588 = vadd.f32 %v1398, %v1587
        %v1589 = vpop.f32.mrb[0].mxu0
        %v1590 = vadd.f32 %v1394, %v1589
        %v1591 = vpop.f32.mrb[0].mxu0
        %v1592 = vadd.f32 %v1398, %v1591
        %1593 = vdwg.mxu0
        %v1594 = vpack.c.bf16 %v1520, %v1516
        %v1595 = vpack.c.bf16 %v1522, %v1518
        %v1596 = vpack.c.bf16 %v1530, %v1526
        %v1597 = vpack.c.bf16 %v1532, %v1528
        %v1598 = vpack.c.bf16 %v1540, %v1536
        %v1599 = vpack.c.bf16 %v1542, %v1538
        %v1600 = vpack.c.bf16 %v1550, %v1546
        %v1601 = vpack.c.bf16 %v1552, %v1548
        %v1602 = vpack.c.bf16 %v1560, %v1556
        %v1603 = vpack.c.bf16 %v1562, %v1558
        %v1604 = vpack.c.bf16 %v1570, %v1566
        %v1605 = vpack.c.bf16 %v1572, %v1568
        %v1606 = vpack.c.bf16 %v1580, %v1576
        %v1607 = vpack.c.bf16 %v1582, %v1578
        %v1608 = vpack.c.bf16 %v1590, %v1586
        %v1609 = vpack.c.bf16 %v1592, %v1588
        %v1626 = vunpack.c.l.b16 %v1594
        %v1627 = vunpack.c.l.b16 %v1595
        %v1628 = vunpack.c.h.b16 %v1594
        %v1629 = vunpack.c.h.b16 %v1595
        %v1630 = vunpack.c.l.b16 %v1596
        %v1631 = vunpack.c.l.b16 %v1597
        %v1632 = vunpack.c.h.b16 %v1596
        %v1633 = vunpack.c.h.b16 %v1597
        %v1634 = vunpack.c.l.b16 %v1598
        %v1635 = vunpack.c.l.b16 %v1599
        %v1636 = vunpack.c.h.b16 %v1598
        %v1637 = vunpack.c.h.b16 %v1599
        %v1638 = vunpack.c.l.b16 %v1600
        %v1639 = vunpack.c.l.b16 %v1601
        %v1640 = vunpack.c.h.b16 %v1600
        %v1641 = vunpack.c.h.b16 %v1601
        %v1642 = vunpack.c.l.b16 %v1602
        %v1643 = vunpack.c.l.b16 %v1603
        %v1644 = vunpack.c.h.b16 %v1602
        %v1645 = vunpack.c.h.b16 %v1603
        %v1646 = vunpack.c.l.b16 %v1604
        %v1647 = vunpack.c.l.b16 %v1605
        %v1648 = vunpack.c.h.b16 %v1604
        %v1649 = vunpack.c.h.b16 %v1605
        %v1650 = vunpack.c.l.b16 %v1606
        %v1651 = vunpack.c.l.b16 %v1607
        %v1652 = vunpack.c.h.b16 %v1606
        %v1653 = vunpack.c.h.b16 %v1607
        %v1654 = vunpack.c.l.b16 %v1608
        %v1655 = vunpack.c.l.b16 %v1609
        %v1656 = vunpack.c.h.b16 %v1608
        %v1657 = vunpack.c.h.b16 %v1609
        %v1658 = vpack.c.b16 %v1627, %v1626
        %v1659 = vpack.c.b16 %v1629, %v1628
        %v1660 = vpack.c.b16 %v1631, %v1630
        %v1661 = vpack.c.b16 %v1633, %v1632
        %v1662 = vpack.c.b16 %v1635, %v1634
        %v1663 = vpack.c.b16 %v1637, %v1636
        %v1664 = vpack.c.b16 %v1639, %v1638
        %v1665 = vpack.c.b16 %v1641, %v1640
        %v1666 = vpack.c.b16 %v1643, %v1642
        %v1667 = vpack.c.b16 %v1645, %v1644
        %v1668 = vpack.c.b16 %v1647, %v1646
        %v1669 = vpack.c.b16 %v1649, %v1648
        %v1670 = vpack.c.b16 %v1651, %v1650
        %v1671 = vpack.c.b16 %v1653, %v1652
        %v1672 = vpack.c.b16 %v1655, %v1654
        %v1673 = vpack.c.b16 %v1657, %v1656
        %1690 = vst [vmem:[%s409] sm:$0xff] %v1658
        %1691 = vst [vmem:[%s409 + $0x8] sm:$0xff] %v1659
        %1692 = vst [vmem:[%s409 + $0x10] sm:$0xff] %v1660
        %1693 = vst [vmem:[%s409 + $0x18] sm:$0xff] %v1661
        %1694 = vst [vmem:[%s409 + $0x20] sm:$0xff] %v1662
        %1695 = vst [vmem:[%s409 + $0x28] sm:$0xff] %v1663
        %1696 = vst [vmem:[%s409 + $0x30] sm:$0xff] %v1664
        %1697 = vst [vmem:[%s409 + $0x38] sm:$0xff] %v1665
        %1698 = vst [vmem:[%s409 + $0x40] sm:$0xff] %v1666
        %1699 = vst [vmem:[%s409 + $0x48] sm:$0xff] %v1667
        %1700 = vst [vmem:[%s409 + $0x50] sm:$0xff] %v1668
        %1701 = vst [vmem:[%s409 + $0x58] sm:$0xff] %v1669
        %1702 = vst [vmem:[%s409 + $0x60] sm:$0xff] %v1670
        %1703 = vst [vmem:[%s409 + $0x68] sm:$0xff] %v1671
        %1704 = vst [vmem:[%s409 + $0x70] sm:$0xff] %v1672
        %1705 = vst [vmem:[%s409 + $0x78] sm:$0xff] %v1673
        %s1706 = sand.u32 %s230, 1
        %s1707 = scalar_lea.sflag [#allocation4], %s1706
        %s1708 = sand.u32 %s230, 1
        %s1709 = smul.addr %s1708, 128
        %s1710 = scalar_lea.vmem [#allocation11], %s1709
        // Predicated region
        $region77: #{tpu_custom_call.1} parent=55 // pred_check
          %p1711 = pneg %p240
        $region78: #{tpu_custom_call.1} parent=55 // pred_check_branch
          %1713 = sbr.rel (%p1711) target = $region80
        $region79: #{tpu_custom_call.1} parent=55 // pred_region
          %s1714 = smul.u32 16, %s28
          %s1716 = ssub.s32 2048, 2048
          %1717 = vsyncadd %s1707, %s1716
          %s1718 = smul.addr %s1714, 2
          %s1719 = smul.addr %s1718, 64
          %s1720 = scalar_lea.hbm %s9, %s1719
          %s1721 = sshll.u32 %s1710, 4
          %s1722 = int_to_ptr.vmem [resolvable:$true] %s1721
          %1727 = dma.vmem_to_hbm [thread:$0]  %s1722, 2048, %s1720, %s1707, 128, 128, 8
        $region80: #{tpu_custom_call.1} parent=55 // pred_fallthru
          _
      $region56: #{tpu_custom_call.1} parent=5 // pred_fallthru
        _
      %p1728 = scmp.le.s32.totalorder 2, %s23
      // Predicated region
      $region81: #{tpu_custom_call.1} parent=5 // pred_check
        %p1729 = pneg %p1728
      $region82: #{tpu_custom_call.1} parent=5 // pred_check_branch
        %1731 = sbr.rel (%p1729) target = $region84
      $region83: #{tpu_custom_call.1} parent=5 // pred_region
        %s1732 = ssub.s32 %s23, 2
        // Predicated region
        $region85: #{tpu_custom_call.1} parent=83 // pred_check
          %p1733 = pneg %p246
        $region86: #{tpu_custom_call.1} parent=83 // pred_check_branch
          %1735 = sbr.rel (%p1733) target = $region88
        $region87: #{tpu_custom_call.1} parent=83 // pred_region
          %s1736 = sand.u32 %s231, 1
          %s1737 = scalar_lea.sflag [#allocation4], %s1736
          %s1738 = sand.u32 %s231, 1
          %s1739 = smul.addr %s1738, 128
          %s1740 = scalar_lea.vmem [#allocation11], %s1739
          %1741 = dma.done %s1737, 2048
        $region88: #{tpu_custom_call.1} parent=83 // pred_fallthru
          _
      $region84: #{tpu_custom_call.1} parent=5 // pred_fallthru
        _
    $region6: #{tpu_custom_call.1} parent=1 // loop_footer
      %s27 = sadd.s32 1, %s23
    $region7: #{tpu_custom_call.1} parent=1 // loop_footer_branch
      %22 = sbr.rel target = $region3
    $region8: #{tpu_custom_call.1} parent=1 // loop_exit
      _
    %1742 = vsyncpa [#allocation3], 1
    %s1743 = scalar_lea.sflag [#allocation3], 1
    %1744 = vsyncpa %s1743, 1
    %1745 = vsyncpa [#allocation6], 1
    %1746 = vsyncpa [#allocation9], 1
    %1747 = vsyncpa [#allocation4], 1
    %s1748 = scalar_lea.sflag [#allocation4], 1
    %1749 = vsyncpa %s1748, 1

</llo_original>
